<compile_context>
chip_gen: v7x
topology: tpu7x:2x2x1
jax: 0.10.0
libtpu: 0.0.40
codegen_flags: <defaults>
</compile_context>

<pallas_src>
import functools

import jax
import jax.numpy as jnp
import numpy as np
from jax.experimental import pallas as pl
from jax.experimental.pallas import tpu as pltpu


def _round_up(x, m):
    return (x + m - 1) // m * m


def _choose_hw_tile(hw, c):
    """HW (lane-axis) tile sized so double-buffered x0/x1 (bf16) + out (f32)
    tiles stay well inside the smallest-generation VMEM (v7x: 64 MiB)."""
    budget = 24 * 1024 * 1024                    # bytes for pipelined tiles
    bytes_per_lane = c * (2 + 2 + 4) * 2         # bf16 x0 + bf16 x1 + f32 out, x2 buffers
    t = min(budget // bytes_per_lane, 8192)      # cap per-step DMA size
    t = max(128, (t // 128) * 128)
    return int(min(t, _round_up(hw, 128)))


def _local_att(x_f32, w1_ref, b1_ref, w2_ref, b2_ref):
    """Folded conv1x1 -> BN -> ReLU -> conv1x1 -> BN on a (C, N) tile.
    Weights are bf16 (MXU path); accumulation and bias adds in f32."""
    h = jnp.dot(w1_ref[...], x_f32.astype(jnp.bfloat16),
                preferred_element_type=jnp.float32) + b1_ref[...]
    h = jnp.maximum(h, 0.0)
    return jnp.dot(w2_ref[...], h.astype(jnp.bfloat16),
                   preferred_element_type=jnp.float32) + b2_ref[...]


def iaff_kernel(x0_ref, x1_ref, xg1_ref,
                wl1_ref, bl1_ref, wl2_ref, bl2_ref,      # local_att   (BN folded)
                wg1_ref, bg1_ref, wg2_ref, bg2_ref,      # global_att  (BN folded)
                wm1_ref, bm1_ref, wm2_ref, bm2_ref,      # local_att2  (BN folded)
                o_ref,
                xi_sum_ref, xg2_ref,
                *, inv_hw):
    p = pl.program_id(1)            # 0: accumulate mean(xi); 1: stage-2 blend + store
    t = pl.program_id(2)            # HW tile index
    n_t = pl.num_programs(2)

    x0 = x0_ref[...].astype(jnp.float32)         # (C, T)
    x1 = x1_ref[...].astype(jnp.float32)
    xa = x0 + x1

    # Stage 1 (recomputed on both passes — cheaper than an HBM round trip for xi).
    xl = _local_att(xa, wl1_ref, bl1_ref, wl2_ref, bl2_ref)
    wei = jax.nn.sigmoid(xl + xg1_ref[...])      # xg1: (C, 1), broadcast over lanes
    xi = x1 + (x0 - x1) * wei                    # == x0*wei + x1*(1 - wei)

    # ---- pass 0: accumulate sum_HW(xi); finalize global_att(mean(xi)) on last tile ----
    tile_sum = jnp.sum(xi, axis=1, keepdims=True)            # (C, 1)

    @pl.when((p == 0) & (t == 0))
    def _():
        xi_sum_ref[...] = tile_sum

    @pl.when((p == 0) & (t > 0))
    def _():
        xi_sum_ref[...] = xi_sum_ref[...] + tile_sum

    @pl.when((p == 0) & (t == n_t - 1))
    def _():
        mean_xi = xi_sum_ref[...] * inv_hw                   # (C, 1), true-HW mean
        g = jnp.dot(wg1_ref[...].astype(jnp.float32), mean_xi,
                    preferred_element_type=jnp.float32) + bg1_ref[...]
        g = jnp.maximum(g, 0.0)
        xg2_ref[...] = jnp.dot(wg2_ref[...].astype(jnp.float32), g,
                               preferred_element_type=jnp.float32) + bg2_ref[...]

    # ---- pass 1: stage-2 local path, blend, lane-dense store ----
    @pl.when(p == 1)
    def _():
        xl2 = _local_att(xi, wm1_ref, bm1_ref, wm2_ref, bm2_ref)
        wei2 = jax.nn.sigmoid(xl2 + xg2_ref[...])
        o_ref[...] = (x1 + (x0 - x1) * wei2).astype(o_ref.dtype)


def iaff_pallas(x0_nchw, x1_nchw, params):
    """x0_nchw, x1_nchw: (B, C, H, W); params: 12 folded arrays (see init)."""
    (wl1, bl1, wl2, bl2, wg1, bg1, wg2, bg2, wm1, bm1, wm2, bm2) = params
    B, C, H, W = x0_nchw.shape
    HW = H * W

    # NCHW -> (B, C, HW) is a free reshape (no transpose). Cast to bf16 at the
    # boundary (no-op if the caller already supplies bf16).
    x0 = jnp.reshape(x0_nchw, (B, C, HW)).astype(jnp.bfloat16)
    x1 = jnp.reshape(x1_nchw, (B, C, HW)).astype(jnp.bfloat16)

    # Stage-1 global branch: AdaptiveAvgPool2d(1) is linear in (x0 + x1), so its
    # per-batch (C,) pre-sigmoid contribution is computed once here (f32, tiny).
    f32 = lambda a: a.astype(jnp.float32)
    xa_mean = jnp.mean(f32(x0) + f32(x1), axis=-1)                        # (B, C)
    h = jnp.maximum(xa_mean @ f32(wg1).T + f32(bg1).reshape(1, -1), 0.0)
    xg1 = (h @ f32(wg2).T + f32(bg2).reshape(1, -1)).reshape(B, C, 1)     # (B, C, 1)

    # Tile the HW (lane) axis; zero padding contributes 0 to every sum and is
    # sliced off at the end.
    tile = _choose_hw_tile(HW, C)
    hw_pad = _round_up(HW, tile)
    if hw_pad != HW:
        x0 = jnp.pad(x0, ((0, 0), (0, 0), (0, hw_pad - HW)))
        x1 = jnp.pad(x1, ((0, 0), (0, 0), (0, hw_pad - HW)))
    n_t = hw_pad // tile

    x_spec = pl.BlockSpec((None, C, tile), lambda b, p, t: (b, 0, t))
    xg1_spec = pl.BlockSpec((None, C, 1), lambda b, p, t: (b, 0, 0))

    def _full_spec(arr):  # small params: full-array blocks, resident across the grid
        return pl.BlockSpec(arr.shape, lambda b, p, t, _nd=arr.ndim: (0,) * _nd)

    param_list = [wl1, bl1, wl2, bl2, wg1, bg1, wg2, bg2, wm1, bm1, wm2, bm2]

    # Pass 0 parks the output block at tile 0 (never written); pass 1 writes
    # each tile exactly once -> every output block hits HBM exactly once.
    out_spec = pl.BlockSpec((None, C, tile), lambda b, p, t: (b, 0, t * p))

    out = pl.pallas_call(
        functools.partial(iaff_kernel, inv_hw=1.0 / HW),
        out_shape=jax.ShapeDtypeStruct((B, C, hw_pad), jnp.float32),
        grid_spec=pltpu.PrefetchScalarGridSpec(
            num_scalar_prefetch=0,
            grid=(B, 2, n_t),
            in_specs=[x_spec, x_spec, xg1_spec] + [_full_spec(a) for a in param_list],
            out_specs=out_spec,
            scratch_shapes=[pltpu.VMEM((C, 1), jnp.float32),   # running sum of xi
                            pltpu.VMEM((C, 1), jnp.float32)],  # stage-2 global logits
        ),
        compiler_params=pltpu.CompilerParams(
            dimension_semantics=("parallel", "arbitrary", "arbitrary"),
            vmem_limit_bytes=48 * 1024 * 1024,
        ),
    )(x0, x1, xg1, *param_list)

    return out[:, :, :HW].reshape(B, C, H, W)


# ----------------------------------------------------------------------------
# Deterministic parameter init: mimic the PyTorch module's shapes and fold each
# (Conv2d 1x1, BatchNorm2d) pair into a single (W, b). Weights are (C_out,
# C_in) bf16 (MXU dtype); biases are (C_out, 1) f32.
# ----------------------------------------------------------------------------
def init_iaff_params(key, channels=64, r=4):
    inter = max(1, int(channels // r))
    keys = iter(jax.random.split(key, 48))
    eps = 1e-5

    def folded_conv_bn(cin, cout):
        w = 0.2 * jax.random.normal(next(keys), (cout, cin), jnp.float32)
        b = 0.1 * jax.random.normal(next(keys), (cout,), jnp.float32)
        gamma = 1.0 + 0.1 * jax.random.normal(next(keys), (cout,), jnp.float32)
        beta = 0.1 * jax.random.normal(next(keys), (cout,), jnp.float32)
        mean = 0.1 * jax.random.normal(next(keys), (cout,), jnp.float32)
        var = jnp.abs(jax.random.normal(next(keys), (cout,), jnp.float32)) + 0.5
        scale = gamma / jnp.sqrt(var + eps)
        w_f = (w * scale[:, None]).astype(jnp.bfloat16)            # (cout, cin)
        b_f = ((b - mean) * scale + beta).reshape(cout, 1)         # (cout, 1) f32
        return w_f, b_f

    def att_block():
        w1, b1 = folded_conv_bn(channels, inter)
        w2, b2 = folded_conv_bn(inter, channels)
        return [w1, b1, w2, b2]

    local_att = att_block()
    global_att = att_block()
    local_att2 = att_block()
    _global_att2 = att_block()   # exists in the PyTorch module but unused by forward()
    return local_att + global_att + local_att2


# ----------------------------------------------------------------------------
# Pure-JAX reference (f32 math on the bf16-rounded inputs/weights).
# ----------------------------------------------------------------------------
def iaff_reference(x0_nchw, x1_nchw, params):
    B, C, H, W = x0_nchw.shape
    HW = H * W
    f32 = lambda a: a.astype(jnp.float32)
    x0 = f32(x0_nchw).reshape(B, C, HW)
    x1 = f32(x1_nchw).reshape(B, C, HW)
    (wl1, bl1, wl2, bl2, wg1, bg1, wg2, bg2, wm1, bm1, wm2, bm2) = params

    def att(x, w1, b1, w2, b2):                       # x: (B, C, N)
        h = jnp.einsum('ic,bcn->bin', f32(w1), x) + f32(b1)[None]
        h = jnp.maximum(h, 0.0)
        return jnp.einsum('ci,bin->bcn', f32(w2), h) + f32(b2)[None]

    xa = x0 + x1
    xl = att(xa, wl1, bl1, wl2, bl2)
    xg = att(jnp.mean(xa, axis=-1, keepdims=True), wg1, bg1, wg2, bg2)
    wei = jax.nn.sigmoid(xl + xg)
    xi = x0 * wei + x1 * (1.0 - wei)
    xl2 = att(xi, wm1, bm1, wm2, bm2)
    xg2 = att(jnp.mean(xi, axis=-1, keepdims=True), wg1, bg1, wg2, bg2)
    wei2 = jax.nn.sigmoid(xl2 + xg2)
    xo = x0 * wei2 + x1 * (1.0 - wei2)
    return xo.reshape(B, C, H, W)


if __name__ == "__main__":
    B, C, H, W = 2, 16, 16, 16    # HW = 256 (multiple of 128)
    r = 4

    key = jax.random.PRNGKey(0)
    k0, k1, kp = jax.random.split(key, 3)
    # Inputs are supplied in bf16 (the kernel's I/O dtype); the reference
    # upcasts the same bf16 values to f32.
    x0 = jax.random.normal(k0, (B, C, H, W), jnp.float32).astype(jnp.bfloat16)
    x1 = jax.random.normal(k1, (B, C, H, W), jnp.float32).astype(jnp.bfloat16)

    params = init_iaff_params(kp, channels=C, r=r)

    out = jax.block_until_ready(iaff_pallas(x0, x1, params))
    ref = jax.block_until_ready(iaff_reference(x0, x1, params))

    # Tolerance covers bf16 matmul inputs vs the f32 reference.
    np.testing.assert_allclose(np.asarray(out), np.asarray(ref), rtol=2e-2, atol=3e-2)

    print("KERNEL_OK")
</pallas_src>

<mosaic_0001>
module attributes {stable_mosaic.version = 11 : i64} {
  func.func @iaff_kernel(%arg0: i32, %arg1: i32, %arg2: i32, %arg3: memref<1x16x256xbf16, #tpu.memory_space<vmem>>, %arg4: memref<1x16x256xbf16, #tpu.memory_space<vmem>>, %arg5: memref<1x16x1xf32, #tpu.memory_space<vmem>>, %arg6: memref<4x16xbf16, #tpu.memory_space<vmem>>, %arg7: memref<4x1xf32, #tpu.memory_space<vmem>>, %arg8: memref<16x4xbf16, #tpu.memory_space<vmem>>, %arg9: memref<16x1xf32, #tpu.memory_space<vmem>>, %arg10: memref<4x16xbf16, #tpu.memory_space<vmem>>, %arg11: memref<4x1xf32, #tpu.memory_space<vmem>>, %arg12: memref<16x4xbf16, #tpu.memory_space<vmem>>, %arg13: memref<16x1xf32, #tpu.memory_space<vmem>>, %arg14: memref<4x16xbf16, #tpu.memory_space<vmem>>, %arg15: memref<4x1xf32, #tpu.memory_space<vmem>>, %arg16: memref<16x4xbf16, #tpu.memory_space<vmem>>, %arg17: memref<16x1xf32, #tpu.memory_space<vmem>>, %arg18: memref<1x16x256xf32, #tpu.memory_space<vmem>>, %arg19: memref<16x1xf32, #tpu.memory_space<vmem>>, %arg20: memref<16x1xf32, #tpu.memory_space<vmem>>) attributes {dimension_semantics = [#tpu.dimension_semantics<parallel>, #tpu.dimension_semantics<arbitrary>, #tpu.dimension_semantics<arbitrary>], iteration_bounds = array<i64: 2, 2, 1>, scalar_prefetch = 0 : i64, scratch_operands = 2 : i64, tpu.core_type = #tpu.core_type<tc>, window_params = [{transform_indices = @transform_0, window_bounds = array<i64: 1, 16, 256>}, {transform_indices = @transform_1, window_bounds = array<i64: 1, 16, 256>}, {transform_indices = @transform_2, window_bounds = array<i64: 1, 16, 1>}, {pipeline_mode = #tpu.pipeline_mode<synchronous>, transform_indices = @transform_3, window_bounds = array<i64: 4, 16>}, {pipeline_mode = #tpu.pipeline_mode<synchronous>, transform_indices = @transform_4, window_bounds = array<i64: 4, 1>}, {pipeline_mode = #tpu.pipeline_mode<synchronous>, transform_indices = @transform_5, window_bounds = array<i64: 16, 4>}, {pipeline_mode = #tpu.pipeline_mode<synchronous>, transform_indices = @transform_6, window_bounds = array<i64: 16, 1>}, {pipeline_mode = #tpu.pipeline_mode<synchronous>, transform_indices = @transform_7, window_bounds = array<i64: 4, 16>}, {pipeline_mode = #tpu.pipeline_mode<synchronous>, transform_indices = @transform_8, window_bounds = array<i64: 4, 1>}, {pipeline_mode = #tpu.pipeline_mode<synchronous>, transform_indices = @transform_9, window_bounds = array<i64: 16, 4>}, {pipeline_mode = #tpu.pipeline_mode<synchronous>, transform_indices = @transform_10, window_bounds = array<i64: 16, 1>}, {pipeline_mode = #tpu.pipeline_mode<synchronous>, transform_indices = @transform_11, window_bounds = array<i64: 4, 16>}, {pipeline_mode = #tpu.pipeline_mode<synchronous>, transform_indices = @transform_12, window_bounds = array<i64: 4, 1>}, {pipeline_mode = #tpu.pipeline_mode<synchronous>, transform_indices = @transform_13, window_bounds = array<i64: 16, 4>}, {pipeline_mode = #tpu.pipeline_mode<synchronous>, transform_indices = @transform_14, window_bounds = array<i64: 16, 1>}, {transform_indices = @transform_15, window_bounds = array<i64: 1, 16, 256>}]} {
    %c0 = arith.constant 0 : index
    %c0_0 = arith.constant 0 : index
    %c0_1 = arith.constant 0 : index
    %0 = vector.load %arg3[%c0, %c0_0, %c0_1] : memref<1x16x256xbf16, #tpu.memory_space<vmem>>, vector<1x16x256xbf16>
    %1 = vector.shape_cast %0 : vector<1x16x256xbf16> to vector<16x256xbf16>
    %2 = arith.extf %1 : vector<16x256xbf16> to vector<16x256xf32>
    %c0_2 = arith.constant 0 : index
    %c0_3 = arith.constant 0 : index
    %c0_4 = arith.constant 0 : index
    %3 = vector.load %arg4[%c0_2, %c0_3, %c0_4] : memref<1x16x256xbf16, #tpu.memory_space<vmem>>, vector<1x16x256xbf16>
    %4 = vector.shape_cast %3 : vector<1x16x256xbf16> to vector<16x256xbf16>
    %5 = arith.extf %4 : vector<16x256xbf16> to vector<16x256xf32>
    %6 = arith.addf %2, %5 : vector<16x256xf32>
    %c0_5 = arith.constant 0 : index
    %c0_6 = arith.constant 0 : index
    %7 = vector.load %arg6[%c0_5, %c0_6] : memref<4x16xbf16, #tpu.memory_space<vmem>>, vector<4x16xbf16>
    %8 = arith.truncf %6 : vector<16x256xf32> to vector<16x256xbf16>
    %cst = arith.constant dense<0.000000e+00> : vector<4x256xf32>
    %9 = tpu.matmul %7, %8, %cst {dimension_numbers = #tpu.dot_dimension_numbers<[1], [0], [0], [1], [0, 0, 1, 1], [], []>} : vector<4x16xbf16>, vector<16x256xbf16>, vector<4x256xf32> -> vector<4x256xf32>
    %c0_7 = arith.constant 0 : index
    %c0_8 = arith.constant 0 : index
    %10 = vector.load %arg7[%c0_7, %c0_8] : memref<4x1xf32, #tpu.memory_space<vmem>>, vector<4x1xf32>
    %11 = vector.broadcast %10 : vector<4x1xf32> to vector<4x256xf32>
    %12 = arith.addf %9, %11 : vector<4x256xf32>
    %cst_9 = arith.constant 0.000000e+00 : f32
    %13 = vector.broadcast %cst_9 : f32 to vector<4x256xf32>
    %14 = arith.maximumf %12, %13 : vector<4x256xf32>
    %c0_10 = arith.constant 0 : index
    %c0_11 = arith.constant 0 : index
    %15 = vector.load %arg8[%c0_10, %c0_11] : memref<16x4xbf16, #tpu.memory_space<vmem>>, vector<16x4xbf16>
    %16 = arith.truncf %14 : vector<4x256xf32> to vector<4x256xbf16>
    %cst_12 = arith.constant dense<0.000000e+00> : vector<16x256xf32>
    %17 = tpu.matmul %15, %16, %cst_12 {dimension_numbers = #tpu.dot_dimension_numbers<[1], [0], [0], [1], [0, 0, 1, 1], [], []>} : vector<16x4xbf16>, vector<4x256xbf16>, vector<16x256xf32> -> vector<16x256xf32>
    %c0_13 = arith.constant 0 : index
    %c0_14 = arith.constant 0 : index
    %18 = vector.load %arg9[%c0_13, %c0_14] : memref<16x1xf32, #tpu.memory_space<vmem>>, vector<16x1xf32>
    %19 = vector.broadcast %18 : vector<16x1xf32> to vector<16x256xf32>
    %20 = arith.addf %17, %19 : vector<16x256xf32>
    %c0_15 = arith.constant 0 : index
    %c0_16 = arith.constant 0 : index
    %c0_17 = arith.constant 0 : index
    %21 = vector.load %arg5[%c0_15, %c0_16, %c0_17] : memref<1x16x1xf32, #tpu.memory_space<vmem>>, vector<1x16x1xf32>
    %22 = vector.shape_cast %21 : vector<1x16x1xf32> to vector<16x1xf32>
    %23 = vector.broadcast %22 : vector<16x1xf32> to vector<16x256xf32>
    %24 = arith.addf %20, %23 : vector<16x256xf32>
    %25 = arith.negf %24 : vector<16x256xf32>
    %26 = math.exp %25 : vector<16x256xf32>
    %cst_18 = arith.constant 1.000000e+00 : f32
    %27 = vector.broadcast %cst_18 : f32 to vector<16x256xf32>
    %28 = arith.addf %27, %26 : vector<16x256xf32>
    %29 = arith.divf %27, %28 : vector<16x256xf32>
    %30 = arith.subf %2, %5 : vector<16x256xf32>
    %31 = arith.mulf %30, %29 : vector<16x256xf32>
    %32 = arith.addf %5, %31 : vector<16x256xf32>
    %cst_19 = arith.constant dense<0.000000e+00> : vector<16xf32>
    %33 = vector.multi_reduction <add>, %32, %cst_19 [1] : vector<16x256xf32> to vector<16xf32>
    %34 = vector.shape_cast %33 : vector<16xf32> to vector<16x1xf32>
    %c0_i32 = arith.constant 0 : i32
    %35 = arith.cmpi eq, %arg1, %c0_i32 : i32
    %c0_i32_20 = arith.constant 0 : i32
    %36 = arith.cmpi eq, %arg2, %c0_i32_20 : i32
    %37 = arith.andi %35, %36 : i1
    %38 = arith.extui %37 : i1 to i32
    %c0_i32_21 = arith.constant 0 : i32
    %39 = arith.cmpi ne, %38, %c0_i32_21 : i32
    scf.if %39 {
      %c0_29 = arith.constant 0 : index
      %c0_30 = arith.constant 0 : index
      %53 = vector.load %arg19[%c0_29, %c0_30] : memref<16x1xf32, #tpu.memory_space<vmem>>, vector<16x1xf32>
      tpu.vector_store %arg19[%c0_29, %c0_30], %34 {strides = array<i32>} : memref<16x1xf32, #tpu.memory_space<vmem>>, vector<16x1xf32>,
    } else {
    }
    %c0_i32_22 = arith.constant 0 : i32
    %40 = arith.cmpi eq, %arg1, %c0_i32_22 : i32
    %c0_i32_23 = arith.constant 0 : i32
    %41 = arith.cmpi sgt, %arg2, %c0_i32_23 : i32
    %42 = arith.andi %40, %41 : i1
    %43 = arith.extui %42 : i1 to i32
    %c0_i32_24 = arith.constant 0 : i32
    %44 = arith.cmpi ne, %43, %c0_i32_24 : i32
    scf.if %44 {
      %c0_29 = arith.constant 0 : index
      %c0_30 = arith.constant 0 : index
      %53 = vector.load %arg19[%c0_29, %c0_30] : memref<16x1xf32, #tpu.memory_space<vmem>>, vector<16x1xf32>
      %54 = arith.addf %53, %34 : vector<16x1xf32>
      %c0_31 = arith.constant 0 : index
      %c0_32 = arith.constant 0 : index
      %55 = vector.load %arg19[%c0_31, %c0_32] : memref<16x1xf32, #tpu.memory_space<vmem>>, vector<16x1xf32>
      tpu.vector_store %arg19[%c0_31, %c0_32], %54 {strides = array<i32>} : memref<16x1xf32, #tpu.memory_space<vmem>>, vector<16x1xf32>,
    } else {
    }
    %c0_i32_25 = arith.constant 0 : i32
    %45 = arith.cmpi eq, %arg1, %c0_i32_25 : i32
    %c0_i32_26 = arith.constant 0 : i32
    %46 = arith.cmpi eq, %arg2, %c0_i32_26 : i32
    %47 = arith.andi %45, %46 : i1
    %48 = arith.extui %47 : i1 to i32
    %c0_i32_27 = arith.constant 0 : i32
    %49 = arith.cmpi ne, %48, %c0_i32_27 : i32
    scf.if %49 {
      %c0_29 = arith.constant 0 : index
      %c0_30 = arith.constant 0 : index
      %53 = vector.load %arg19[%c0_29, %c0_30] : memref<16x1xf32, #tpu.memory_space<vmem>>, vector<16x1xf32>
      %cst_31 = arith.constant 3.906250e-03 : f32
      %54 = vector.broadcast %cst_31 : f32 to vector<16x1xf32>
      %55 = arith.mulf %53, %54 : vector<16x1xf32>
      %c0_32 = arith.constant 0 : index
      %c0_33 = arith.constant 0 : index
      %56 = vector.load %arg10[%c0_32, %c0_33] : memref<4x16xbf16, #tpu.memory_space<vmem>>, vector<4x16xbf16>
      %57 = arith.extf %56 : vector<4x16xbf16> to vector<4x16xf32>
      %cst_34 = arith.constant dense<0.000000e+00> : vector<4x1xf32>
      %58 = tpu.matmul %57, %55, %cst_34 {dimension_numbers = #tpu.dot_dimension_numbers<[1], [0], [0], [1], [0, 0, 1, 1], [], []>} : vector<4x16xf32>, vector<16x1xf32>, vector<4x1xf32> -> vector<4x1xf32>
      %c0_35 = arith.constant 0 : index
      %c0_36 = arith.constant 0 : index
      %59 = vector.load %arg11[%c0_35, %c0_36] : memref<4x1xf32, #tpu.memory_space<vmem>>, vector<4x1xf32>
      %60 = arith.addf %58, %59 : vector<4x1xf32>
      %cst_37 = arith.constant 0.000000e+00 : f32
      %61 = vector.broadcast %cst_37 : f32 to vector<4x1xf32>
      %62 = arith.maximumf %60, %61 : vector<4x1xf32>
      %c0_38 = arith.constant 0 : index
      %c0_39 = arith.constant 0 : index
      %63 = vector.load %arg12[%c0_38, %c0_39] : memref<16x4xbf16, #tpu.memory_space<vmem>>, vector<16x4xbf16>
      %64 = arith.extf %63 : vector<16x4xbf16> to vector<16x4xf32>
      %cst_40 = arith.constant dense<0.000000e+00> : vector<16x1xf32>
      %65 = tpu.matmul %64, %62, %cst_40 {dimension_numbers = #tpu.dot_dimension_numbers<[1], [0], [0], [1], [0, 0, 1, 1], [], []>} : vector<16x4xf32>, vector<4x1xf32>, vector<16x1xf32> -> vector<16x1xf32>
      %c0_41 = arith.constant 0 : index
      %c0_42 = arith.constant 0 : index
      %66 = vector.load %arg13[%c0_41, %c0_42] : memref<16x1xf32, #tpu.memory_space<vmem>>, vector<16x1xf32>
      %67 = arith.addf %65, %66 : vector<16x1xf32>
      %c0_43 = arith.constant 0 : index
      %c0_44 = arith.constant 0 : index
      %68 = vector.load %arg20[%c0_43, %c0_44] : memref<16x1xf32, #tpu.memory_space<vmem>>, vector<16x1xf32>
      tpu.vector_store %arg20[%c0_43, %c0_44], %67 {strides = array<i32>} : memref<16x1xf32, #tpu.memory_space<vmem>>, vector<16x1xf32>,
    } else {
    }
    %c1_i32 = arith.constant 1 : i32
    %50 = arith.cmpi eq, %arg1, %c1_i32 : i32
    %51 = arith.extui %50 : i1 to i32
    %c0_i32_28 = arith.constant 0 : i32
    %52 = arith.cmpi ne, %51, %c0_i32_28 : i32
    scf.if %52 {
      %c0_29 = arith.constant 0 : index
      %c0_30 = arith.constant 0 : index
      %53 = vector.load %arg14[%c0_29, %c0_30] : memref<4x16xbf16, #tpu.memory_space<vmem>>, vector<4x16xbf16>
      %54 = arith.truncf %32 : vector<16x256xf32> to vector<16x256xbf16>
      %cst_31 = arith.constant dense<0.000000e+00> : vector<4x256xf32>
      %55 = tpu.matmul %53, %54, %cst_31 {dimension_numbers = #tpu.dot_dimension_numbers<[1], [0], [0], [1], [0, 0, 1, 1], [], []>} : vector<4x16xbf16>, vector<16x256xbf16>, vector<4x256xf32> -> vector<4x256xf32>
      %c0_32 = arith.constant 0 : index
      %c0_33 = arith.constant 0 : index
      %56 = vector.load %arg15[%c0_32, %c0_33] : memref<4x1xf32, #tpu.memory_space<vmem>>, vector<4x1xf32>
      %57 = vector.broadcast %56 : vector<4x1xf32> to vector<4x256xf32>
      %58 = arith.addf %55, %57 : vector<4x256xf32>
      %cst_34 = arith.constant 0.000000e+00 : f32
      %59 = vector.broadcast %cst_34 : f32 to vector<4x256xf32>
      %60 = arith.maximumf %58, %59 : vector<4x256xf32>
      %c0_35 = arith.constant 0 : index
      %c0_36 = arith.constant 0 : index
      %61 = vector.load %arg16[%c0_35, %c0_36] : memref<16x4xbf16, #tpu.memory_space<vmem>>, vector<16x4xbf16>
      %62 = arith.truncf %60 : vector<4x256xf32> to vector<4x256xbf16>
      %cst_37 = arith.constant dense<0.000000e+00> : vector<16x256xf32>
      %63 = tpu.matmul %61, %62, %cst_37 {dimension_numbers = #tpu.dot_dimension_numbers<[1], [0], [0], [1], [0, 0, 1, 1], [], []>} : vector<16x4xbf16>, vector<4x256xbf16>, vector<16x256xf32> -> vector<16x256xf32>
      %c0_38 = arith.constant 0 : index
      %c0_39 = arith.constant 0 : index
      %64 = vector.load %arg17[%c0_38, %c0_39] : memref<16x1xf32, #tpu.memory_space<vmem>>, vector<16x1xf32>
      %65 = vector.broadcast %64 : vector<16x1xf32> to vector<16x256xf32>
      %66 = arith.addf %63, %65 : vector<16x256xf32>
      %c0_40 = arith.constant 0 : index
      %c0_41 = arith.constant 0 : index
      %67 = vector.load %arg20[%c0_40, %c0_41] : memref<16x1xf32, #tpu.memory_space<vmem>>, vector<16x1xf32>
      %68 = vector.broadcast %67 : vector<16x1xf32> to vector<16x256xf32>
      %69 = arith.addf %66, %68 : vector<16x256xf32>
      %70 = arith.negf %69 : vector<16x256xf32>
      %71 = math.exp %70 : vector<16x256xf32>
      %cst_42 = arith.constant 1.000000e+00 : f32
      %72 = vector.broadcast %cst_42 : f32 to vector<16x256xf32>
      %73 = arith.addf %72, %71 : vector<16x256xf32>
      %74 = arith.divf %72, %73 : vector<16x256xf32>
      %75 = arith.subf %2, %5 : vector<16x256xf32>
      %76 = arith.mulf %75, %74 : vector<16x256xf32>
      %77 = arith.addf %5, %76 : vector<16x256xf32>
      %c0_43 = arith.constant 0 : index
      %c0_44 = arith.constant 0 : index
      %c0_45 = arith.constant 0 : index
      %78 = vector.load %arg18[%c0_43, %c0_44, %c0_45] : memref<1x16x256xf32, #tpu.memory_space<vmem>>, vector<1x16x256xf32>
      %79 = vector.shape_cast %78 : vector<1x16x256xf32> to vector<16x256xf32>
      %80 = vector.shape_cast %77 : vector<16x256xf32> to vector<1x16x256xf32>
      tpu.vector_store %arg18[%c0_43, %c0_44, %c0_45], %80 {strides = array<i32>} : memref<1x16x256xf32, #tpu.memory_space<vmem>>, vector<1x16x256xf32>,
    } else {
    }
    return
  }
  func.func @transform_0(%arg0: i32, %arg1: i32, %arg2: i32) -> (i32, i32, i32) {
    %c0_i32 = arith.constant 0 : i32
    %c0_i32_0 = arith.constant 0 : i32
    return %arg0, %c0_i32, %arg2 : i32, i32, i32
  }
  func.func @transform_1(%arg0: i32, %arg1: i32, %arg2: i32) -> (i32, i32, i32) {
    %c0_i32 = arith.constant 0 : i32
    %c0_i32_0 = arith.constant 0 : i32
    return %arg0, %c0_i32, %arg2 : i32, i32, i32
  }
  func.func @transform_2(%arg0: i32, %arg1: i32, %arg2: i32) -> (i32, i32, i32) {
    %c0_i32 = arith.constant 0 : i32
    %c0_i32_0 = arith.constant 0 : i32
    %c0_i32_1 = arith.constant 0 : i32
    return %arg0, %c0_i32, %c0_i32_0 : i32, i32, i32
  }
  func.func @transform_3(%arg0: i32, %arg1: i32, %arg2: i32) -> (i32, i32) {
    %c0_i32 = arith.constant 0 : i32
    %c0_i32_0 = arith.constant 0 : i32
    %c0_i32_1 = arith.constant 0 : i32
    return %c0_i32, %c0_i32_0 : i32, i32
  }
  func.func @transform_4(%arg0: i32, %arg1: i32, %arg2: i32) -> (i32, i32) {
    %c0_i32 = arith.constant 0 : i32
    %c0_i32_0 = arith.constant 0 : i32
    %c0_i32_1 = arith.constant 0 : i32
    return %c0_i32, %c0_i32_0 : i32, i32
  }
  func.func @transform_5(%arg0: i32, %arg1: i32, %arg2: i32) -> (i32, i32) {
    %c0_i32 = arith.constant 0 : i32
    %c0_i32_0 = arith.constant 0 : i32
    %c0_i32_1 = arith.constant 0 : i32
    return %c0_i32, %c0_i32_0 : i32, i32
  }
  func.func @transform_6(%arg0: i32, %arg1: i32, %arg2: i32) -> (i32, i32) {
    %c0_i32 = arith.constant 0 : i32
    %c0_i32_0 = arith.constant 0 : i32
    %c0_i32_1 = arith.constant 0 : i32
    return %c0_i32, %c0_i32_0 : i32, i32
  }
  func.func @transform_7(%arg0: i32, %arg1: i32, %arg2: i32) -> (i32, i32) {
    %c0_i32 = arith.constant 0 : i32
    %c0_i32_0 = arith.constant 0 : i32
    %c0_i32_1 = arith.constant 0 : i32
    return %c0_i32, %c0_i32_0 : i32, i32
  }
  func.func @transform_8(%arg0: i32, %arg1: i32, %arg2: i32) -> (i32, i32) {
    %c0_i32 = arith.constant 0 : i32
    %c0_i32_0 = arith.constant 0 : i32
    %c0_i32_1 = arith.constant 0 : i32
    return %c0_i32, %c0_i32_0 : i32, i32
  }
  func.func @transform_9(%arg0: i32, %arg1: i32, %arg2: i32) -> (i32, i32) {
    %c0_i32 = arith.constant 0 : i32
    %c0_i32_0 = arith.constant 0 : i32
    %c0_i32_1 = arith.constant 0 : i32
    return %c0_i32, %c0_i32_0 : i32, i32
  }
  func.func @transform_10(%arg0: i32, %arg1: i32, %arg2: i32) -> (i32, i32) {
    %c0_i32 = arith.constant 0 : i32
    %c0_i32_0 = arith.constant 0 : i32
    %c0_i32_1 = arith.constant 0 : i32
    return %c0_i32, %c0_i32_0 : i32, i32
  }
  func.func @transform_11(%arg0: i32, %arg1: i32, %arg2: i32) -> (i32, i32) {
    %c0_i32 = arith.constant 0 : i32
    %c0_i32_0 = arith.constant 0 : i32
    %c0_i32_1 = arith.constant 0 : i32
    return %c0_i32, %c0_i32_0 : i32, i32
  }
  func.func @transform_12(%arg0: i32, %arg1: i32, %arg2: i32) -> (i32, i32) {
    %c0_i32 = arith.constant 0 : i32
    %c0_i32_0 = arith.constant 0 : i32
    %c0_i32_1 = arith.constant 0 : i32
    return %c0_i32, %c0_i32_0 : i32, i32
  }
  func.func @transform_13(%arg0: i32, %arg1: i32, %arg2: i32) -> (i32, i32) {
    %c0_i32 = arith.constant 0 : i32
    %c0_i32_0 = arith.constant 0 : i32
    %c0_i32_1 = arith.constant 0 : i32
    return %c0_i32, %c0_i32_0 : i32, i32
  }
  func.func @transform_14(%arg0: i32, %arg1: i32, %arg2: i32) -> (i32, i32) {
    %c0_i32 = arith.constant 0 : i32
    %c0_i32_0 = arith.constant 0 : i32
    %c0_i32_1 = arith.constant 0 : i32
    return %c0_i32, %c0_i32_0 : i32, i32
  }
  func.func @transform_15(%arg0: i32, %arg1: i32, %arg2: i32) -> (i32, i32, i32) {
    %0 = arith.muli %arg2, %arg1 : i32
    %c0_i32 = arith.constant 0 : i32
    %c0_i32_0 = arith.constant 0 : i32
    return %arg0, %c0_i32, %0 : i32, i32, i32
  }
}

</mosaic_0001>

<llo_original>
// kernel: tpu_custom_call.1
$region0: #{tpu_custom_call.1}
  #allocation0 [shape = 'u32[]', space=smem, size = 0x4, offset = 0x4, fixed_abs, tag = 'smem constant byte address 0x4 - core index']
  #allocation1 [shape = 'u32[144,128]{1,0:T(1,128)}', space=vmem, size = 0x12000, scoped, tag = 'internal scratch']
  #allocation2 [shape = 'f32[16,1]{1,0:T(8,128)}', space=vmem, size = 0x2000, scoped, tag = 'scratch operand']
  #allocation3 [shape = 'f32[16,1]{1,0:T(8,128)}', space=vmem, size = 0x2000, scoped, tag = 'scratch operand']
  %s0 = inlined_call_operand.vmem [shape: bf16[2,16,256], index: 0, kind: input, shape index: {}]
  %s1 = inlined_call_operand.vmem [shape: bf16[2,16,256], index: 1, kind: input, shape index: {}]
  %s2 = inlined_call_operand.vmem [shape: f32[2,16,1], index: 2, kind: input, shape index: {}]
  %s3 = inlined_call_operand.vmem [shape: bf16[4,16], index: 3, kind: input, shape index: {}]
  %s4 = inlined_call_operand.vmem [shape: f32[4,1], index: 4, kind: input, shape index: {}]
  %s5 = inlined_call_operand.vmem [shape: bf16[16,4], index: 5, kind: input, shape index: {}]
  %s6 = inlined_call_operand.vmem [shape: f32[16,1], index: 6, kind: input, shape index: {}]
  %s7 = inlined_call_operand.vmem [shape: bf16[4,16], index: 7, kind: input, shape index: {}]
  %s8 = inlined_call_operand.vmem [shape: f32[4,1], index: 8, kind: input, shape index: {}]
  %s9 = inlined_call_operand.vmem [shape: bf16[16,4], index: 9, kind: input, shape index: {}]
  %s10 = inlined_call_operand.vmem [shape: f32[16,1], index: 10, kind: input, shape index: {}]
  %s11 = inlined_call_operand.vmem [shape: bf16[4,16], index: 11, kind: input, shape index: {}]
  %s12 = inlined_call_operand.vmem [shape: f32[4,1], index: 12, kind: input, shape index: {}]
  %s13 = inlined_call_operand.vmem [shape: bf16[16,4], index: 13, kind: input, shape index: {}]
  %s14 = inlined_call_operand.vmem [shape: f32[16,1], index: 14, kind: input, shape index: {}]
  %s15 = inlined_call_operand.hbm [shape: f32[2,16,256], index: 15, kind: output, shape index: {}]
  %s16 = sld [smem:[#allocation0]]
  $region109: #{tpu_custom_call.1} parent=0
    _
  %s18 = ssub.s32 1, %s16
  %s19 = scalar_select 0, %s18, %s16
  $region1: #{tpu_custom_call.1} parent=0
    #allocation4 [shape = 'u8[32768]{0}', space=vmem, size = 0x8000, scoped, tag = 'output window, operand 0']
    #allocation5 [shape = 's32[2]{0}', space=sflag, size = 0x8, scoped, tag = 'scoped memory for tpu_custom_call.1']
    %20 = vsyncpa [#allocation5], 0
    %s21 = scalar_lea.sflag [#allocation5], 1
    %22 = vsyncpa %s21, 0
    loop: start=0, step=1, limit=6
    $region2: #{tpu_custom_call.1} parent=1 // loop_pre_header
      _
    $region3: #{tpu_custom_call.1} parent=1 // loop_header
      %s24 = sphi 0, %s28
      %p25 = scmp.ge.s32.totalorder %s24, 6
      %s31 = sphi 0, %s50
      %s32 = sphi 0, %s46
      %s33 = sphi 0, %s42
      %s34 = sphi 0, %s31
      %s35 = sphi 0, %s32
      %s36 = sphi 0, %s33
      %s37 = sphi 0, %s34
      %s38 = sphi 0, %s35
      %s39 = sphi 0, %s36
      %s55 = sphi 0, %s57
      %s58 = sphi 0, %s55
      %s59 = sphi 0, %s58
      %s75 = sphi 0, %s59
      %s83 = sphi 0, %s85
      %s86 = sphi 0, %s83
      %s87 = sphi 0, %s86
      %s103 = sphi 0, %s87
      %s109 = sphi 0, %s111
      %s112 = sphi 0, %s109
      %s113 = sphi 0, %s112
      %s129 = sphi 0, %s113
      %s133 = sphi 0, %s133
      %s135 = sphi 0, %s133
      %s136 = sphi 0, %s135
      %s150 = sphi 0, %s136
      %s154 = sphi 0, %s154
      %s156 = sphi 0, %s154
      %s157 = sphi 0, %s156
      %s171 = sphi 0, %s157
      %s175 = sphi 0, %s175
      %s177 = sphi 0, %s175
      %s178 = sphi 0, %s177
      %s192 = sphi 0, %s178
      %s196 = sphi 0, %s196
      %s198 = sphi 0, %s196
      %s199 = sphi 0, %s198
      %s213 = sphi 0, %s199
      %s217 = sphi 0, %s217
      %s219 = sphi 0, %s217
      %s220 = sphi 0, %s219
      %s234 = sphi 0, %s220
      %s238 = sphi 0, %s238
      %s240 = sphi 0, %s238
      %s241 = sphi 0, %s240
      %s255 = sphi 0, %s241
      %s259 = sphi 0, %s259
      %s261 = sphi 0, %s259
      %s262 = sphi 0, %s261
      %s276 = sphi 0, %s262
      %s280 = sphi 0, %s280
      %s282 = sphi 0, %s280
      %s283 = sphi 0, %s282
      %s297 = sphi 0, %s283
      %s301 = sphi 0, %s301
      %s303 = sphi 0, %s301
      %s304 = sphi 0, %s303
      %s318 = sphi 0, %s304
      %s322 = sphi 0, %s322
      %s324 = sphi 0, %s322
      %s325 = sphi 0, %s324
      %s339 = sphi 0, %s325
      %s343 = sphi 0, %s343
      %s345 = sphi 0, %s343
      %s346 = sphi 0, %s345
      %s360 = sphi 0, %s346
      %s364 = sphi 0, %s364
      %s366 = sphi 0, %s364
      %s367 = sphi 0, %s366
      %s381 = sphi 0, %s367
      %s391 = sphi 0, %s393
      %s394 = sphi 0, %s391
      %s395 = sphi 0, %s394
      %s411 = sphi 0, %s395
    $region4: #{tpu_custom_call.1} parent=1 // loop_header_branch
      %27 = sbr.rel (%p25) target = $region8
    $region5: #{tpu_custom_call.1} parent=1 // loop_body
      %s29 = ssub.s32 %s24, 1
      %s30 = ssub.s32 %s24, 2
      %s40 = sadd.s32 1, %s33
      %p41 = scmp.ge.s32.totalorder %s40, 1
      %s42 = scalar_select %p41, 0, %s40
      %s43 = sadd.s32 1, %s32
      %s44 = scalar_select %p41, %s43, %s32
      %p45 = scmp.ge.s32.totalorder %s44, 2
      %s46 = scalar_select %p45, 0, %s44
      %s47 = sadd.s32 1, %s31
      %s48 = scalar_select %p45, %s47, %s31
      %p49 = scmp.ge.s32.totalorder %s48, 2
      %s50 = scalar_select %p49, 0, %s48
      %s51 = ssub.s32 %s31, %s50
      %s52 = ssub.s32 %s33, %s42
      %s53 = sor.u32 %s51, %s52
      %p54 = scmp.eq.s32.totalorder %s53, 0
      %s56 = sadd.s32 %s55, 1
      %s57 = scalar_select %p54, %s55, %s56
      %p60 = pneg %p54
      %p61 = scmp.eq.s32.totalorder %s24, 3
      %p62 = por %p60, %p61
      %p63 = scmp.ne.s32.totalorder %s55, %s58
      %p64 = scmp.eq.s32.totalorder %s24, 0
      %p65 = por %p63, %p64
      %p66 = scmp.ne.s32.totalorder %s55, %s58
      %p67 = scmp.eq.s32.totalorder %s29, 3
      %p68 = por %p66, %p67
      %p69 = scmp.ne.s32.totalorder %s58, %s59
      %p70 = scmp.eq.s32.totalorder %s29, 0
      %p71 = por %p69, %p70
      %p72 = scmp.ne.s32.totalorder %s58, %s59
      %p73 = scmp.eq.s32.totalorder %s30, 3
      %p74 = por %p72, %p73
      %p76 = scmp.ne.s32.totalorder %s59, %s75
      %p77 = scmp.eq.s32.totalorder %s30, 0
      %p78 = por %p76, %p77
      %s79 = ssub.s32 %s31, %s50
      %s80 = ssub.s32 %s33, %s42
      %s81 = sor.u32 %s79, %s80
      %p82 = scmp.eq.s32.totalorder %s81, 0
      %s84 = sadd.s32 %s83, 1
      %s85 = scalar_select %p82, %s83, %s84
      %p88 = pneg %p82
      %p89 = scmp.eq.s32.totalorder %s24, 3
      %p90 = por %p88, %p89
      %p91 = scmp.ne.s32.totalorder %s83, %s86
      %p92 = scmp.eq.s32.totalorder %s24, 0
      %p93 = por %p91, %p92
      %p94 = scmp.ne.s32.totalorder %s83, %s86
      %p95 = scmp.eq.s32.totalorder %s29, 3
      %p96 = por %p94, %p95
      %p97 = scmp.ne.s32.totalorder %s86, %s87
      %p98 = scmp.eq.s32.totalorder %s29, 0
      %p99 = por %p97, %p98
      %p100 = scmp.ne.s32.totalorder %s86, %s87
      %p101 = scmp.eq.s32.totalorder %s30, 3
      %p102 = por %p100, %p101
      %p104 = scmp.ne.s32.totalorder %s87, %s103
      %p105 = scmp.eq.s32.totalorder %s30, 0
      %p106 = por %p104, %p105
      %s107 = ssub.s32 %s31, %s50
      %p108 = scmp.eq.s32.totalorder %s107, 0
      %s110 = sadd.s32 %s109, 1
      %s111 = scalar_select %p108, %s109, %s110
      %p114 = pneg %p108
      %p115 = scmp.eq.s32.totalorder %s24, 3
      %p116 = por %p114, %p115
      %p117 = scmp.ne.s32.totalorder %s109, %s112
      %p118 = scmp.eq.s32.totalorder %s24, 0
      %p119 = por %p117, %p118
      %p120 = scmp.ne.s32.totalorder %s109, %s112
      %p121 = scmp.eq.s32.totalorder %s29, 3
      %p122 = por %p120, %p121
      %p123 = scmp.ne.s32.totalorder %s112, %s113
      %p124 = scmp.eq.s32.totalorder %s29, 0
      %p125 = por %p123, %p124
      %p126 = scmp.ne.s32.totalorder %s112, %s113
      %p127 = scmp.eq.s32.totalorder %s30, 3
      %p128 = por %p126, %p127
      %p130 = scmp.ne.s32.totalorder %s113, %s129
      %p131 = scmp.eq.s32.totalorder %s30, 0
      %p132 = por %p130, %p131
      %s134 = sadd.s32 %s133, 1
      %p137 = scmp.eq.s32.totalorder %s24, 3
      %p138 = scmp.ne.s32.totalorder %s133, %s135
      %p139 = scmp.eq.s32.totalorder %s24, 0
      %p140 = por %p138, %p139
      %p141 = scmp.ne.s32.totalorder %s133, %s135
      %p142 = scmp.eq.s32.totalorder %s29, 3
      %p143 = por %p141, %p142
      %p144 = scmp.ne.s32.totalorder %s135, %s136
      %p145 = scmp.eq.s32.totalorder %s29, 0
      %p146 = por %p144, %p145
      %p147 = scmp.ne.s32.totalorder %s135, %s136
      %p148 = scmp.eq.s32.totalorder %s30, 3
      %p149 = por %p147, %p148
      %p151 = scmp.ne.s32.totalorder %s136, %s150
      %p152 = scmp.eq.s32.totalorder %s30, 0
      %p153 = por %p151, %p152
      %s155 = sadd.s32 %s154, 1
      %p158 = scmp.eq.s32.totalorder %s24, 3
      %p159 = scmp.ne.s32.totalorder %s154, %s156
      %p160 = scmp.eq.s32.totalorder %s24, 0
      %p161 = por %p159, %p160
      %p162 = scmp.ne.s32.totalorder %s154, %s156
      %p163 = scmp.eq.s32.totalorder %s29, 3
      %p164 = por %p162, %p163
      %p165 = scmp.ne.s32.totalorder %s156, %s157
      %p166 = scmp.eq.s32.totalorder %s29, 0
      %p167 = por %p165, %p166
      %p168 = scmp.ne.s32.totalorder %s156, %s157
      %p169 = scmp.eq.s32.totalorder %s30, 3
      %p170 = por %p168, %p169
      %p172 = scmp.ne.s32.totalorder %s157, %s171
      %p173 = scmp.eq.s32.totalorder %s30, 0
      %p174 = por %p172, %p173
      %s176 = sadd.s32 %s175, 1
      %p179 = scmp.eq.s32.totalorder %s24, 3
      %p180 = scmp.ne.s32.totalorder %s175, %s177
      %p181 = scmp.eq.s32.totalorder %s24, 0
      %p182 = por %p180, %p181
      %p183 = scmp.ne.s32.totalorder %s175, %s177
      %p184 = scmp.eq.s32.totalorder %s29, 3
      %p185 = por %p183, %p184
      %p186 = scmp.ne.s32.totalorder %s177, %s178
      %p187 = scmp.eq.s32.totalorder %s29, 0
      %p188 = por %p186, %p187
      %p189 = scmp.ne.s32.totalorder %s177, %s178
      %p190 = scmp.eq.s32.totalorder %s30, 3
      %p191 = por %p189, %p190
      %p193 = scmp.ne.s32.totalorder %s178, %s192
      %p194 = scmp.eq.s32.totalorder %s30, 0
      %p195 = por %p193, %p194
      %s197 = sadd.s32 %s196, 1
      %p200 = scmp.eq.s32.totalorder %s24, 3
      %p201 = scmp.ne.s32.totalorder %s196, %s198
      %p202 = scmp.eq.s32.totalorder %s24, 0
      %p203 = por %p201, %p202
      %p204 = scmp.ne.s32.totalorder %s196, %s198
      %p205 = scmp.eq.s32.totalorder %s29, 3
      %p206 = por %p204, %p205
      %p207 = scmp.ne.s32.totalorder %s198, %s199
      %p208 = scmp.eq.s32.totalorder %s29, 0
      %p209 = por %p207, %p208
      %p210 = scmp.ne.s32.totalorder %s198, %s199
      %p211 = scmp.eq.s32.totalorder %s30, 3
      %p212 = por %p210, %p211
      %p214 = scmp.ne.s32.totalorder %s199, %s213
      %p215 = scmp.eq.s32.totalorder %s30, 0
      %p216 = por %p214, %p215
      %s218 = sadd.s32 %s217, 1
      %p221 = scmp.eq.s32.totalorder %s24, 3
      %p222 = scmp.ne.s32.totalorder %s217, %s219
      %p223 = scmp.eq.s32.totalorder %s24, 0
      %p224 = por %p222, %p223
      %p225 = scmp.ne.s32.totalorder %s217, %s219
      %p226 = scmp.eq.s32.totalorder %s29, 3
      %p227 = por %p225, %p226
      %p228 = scmp.ne.s32.totalorder %s219, %s220
      %p229 = scmp.eq.s32.totalorder %s29, 0
      %p230 = por %p228, %p229
      %p231 = scmp.ne.s32.totalorder %s219, %s220
      %p232 = scmp.eq.s32.totalorder %s30, 3
      %p233 = por %p231, %p232
      %p235 = scmp.ne.s32.totalorder %s220, %s234
      %p236 = scmp.eq.s32.totalorder %s30, 0
      %p237 = por %p235, %p236
      %s239 = sadd.s32 %s238, 1
      %p242 = scmp.eq.s32.totalorder %s24, 3
      %p243 = scmp.ne.s32.totalorder %s238, %s240
      %p244 = scmp.eq.s32.totalorder %s24, 0
      %p245 = por %p243, %p244
      %p246 = scmp.ne.s32.totalorder %s238, %s240
      %p247 = scmp.eq.s32.totalorder %s29, 3
      %p248 = por %p246, %p247
      %p249 = scmp.ne.s32.totalorder %s240, %s241
      %p250 = scmp.eq.s32.totalorder %s29, 0
      %p251 = por %p249, %p250
      %p252 = scmp.ne.s32.totalorder %s240, %s241
      %p253 = scmp.eq.s32.totalorder %s30, 3
      %p254 = por %p252, %p253
      %p256 = scmp.ne.s32.totalorder %s241, %s255
      %p257 = scmp.eq.s32.totalorder %s30, 0
      %p258 = por %p256, %p257
      %s260 = sadd.s32 %s259, 1
      %p263 = scmp.eq.s32.totalorder %s24, 3
      %p264 = scmp.ne.s32.totalorder %s259, %s261
      %p265 = scmp.eq.s32.totalorder %s24, 0
      %p266 = por %p264, %p265
      %p267 = scmp.ne.s32.totalorder %s259, %s261
      %p268 = scmp.eq.s32.totalorder %s29, 3
      %p269 = por %p267, %p268
      %p270 = scmp.ne.s32.totalorder %s261, %s262
      %p271 = scmp.eq.s32.totalorder %s29, 0
      %p272 = por %p270, %p271
      %p273 = scmp.ne.s32.totalorder %s261, %s262
      %p274 = scmp.eq.s32.totalorder %s30, 3
      %p275 = por %p273, %p274
      %p277 = scmp.ne.s32.totalorder %s262, %s276
      %p278 = scmp.eq.s32.totalorder %s30, 0
      %p279 = por %p277, %p278
      %s281 = sadd.s32 %s280, 1
      %p284 = scmp.eq.s32.totalorder %s24, 3
      %p285 = scmp.ne.s32.totalorder %s280, %s282
      %p286 = scmp.eq.s32.totalorder %s24, 0
      %p287 = por %p285, %p286
      %p288 = scmp.ne.s32.totalorder %s280, %s282
      %p289 = scmp.eq.s32.totalorder %s29, 3
      %p290 = por %p288, %p289
      %p291 = scmp.ne.s32.totalorder %s282, %s283
      %p292 = scmp.eq.s32.totalorder %s29, 0
      %p293 = por %p291, %p292
      %p294 = scmp.ne.s32.totalorder %s282, %s283
      %p295 = scmp.eq.s32.totalorder %s30, 3
      %p296 = por %p294, %p295
      %p298 = scmp.ne.s32.totalorder %s283, %s297
      %p299 = scmp.eq.s32.totalorder %s30, 0
      %p300 = por %p298, %p299
      %s302 = sadd.s32 %s301, 1
      %p305 = scmp.eq.s32.totalorder %s24, 3
      %p306 = scmp.ne.s32.totalorder %s301, %s303
      %p307 = scmp.eq.s32.totalorder %s24, 0
      %p308 = por %p306, %p307
      %p309 = scmp.ne.s32.totalorder %s301, %s303
      %p310 = scmp.eq.s32.totalorder %s29, 3
      %p311 = por %p309, %p310
      %p312 = scmp.ne.s32.totalorder %s303, %s304
      %p313 = scmp.eq.s32.totalorder %s29, 0
      %p314 = por %p312, %p313
      %p315 = scmp.ne.s32.totalorder %s303, %s304
      %p316 = scmp.eq.s32.totalorder %s30, 3
      %p317 = por %p315, %p316
      %p319 = scmp.ne.s32.totalorder %s304, %s318
      %p320 = scmp.eq.s32.totalorder %s30, 0
      %p321 = por %p319, %p320
      %s323 = sadd.s32 %s322, 1
      %p326 = scmp.eq.s32.totalorder %s24, 3
      %p327 = scmp.ne.s32.totalorder %s322, %s324
      %p328 = scmp.eq.s32.totalorder %s24, 0
      %p329 = por %p327, %p328
      %p330 = scmp.ne.s32.totalorder %s322, %s324
      %p331 = scmp.eq.s32.totalorder %s29, 3
      %p332 = por %p330, %p331
      %p333 = scmp.ne.s32.totalorder %s324, %s325
      %p334 = scmp.eq.s32.totalorder %s29, 0
      %p335 = por %p333, %p334
      %p336 = scmp.ne.s32.totalorder %s324, %s325
      %p337 = scmp.eq.s32.totalorder %s30, 3
      %p338 = por %p336, %p337
      %p340 = scmp.ne.s32.totalorder %s325, %s339
      %p341 = scmp.eq.s32.totalorder %s30, 0
      %p342 = por %p340, %p341
      %s344 = sadd.s32 %s343, 1
      %p347 = scmp.eq.s32.totalorder %s24, 3
      %p348 = scmp.ne.s32.totalorder %s343, %s345
      %p349 = scmp.eq.s32.totalorder %s24, 0
      %p350 = por %p348, %p349
      %p351 = scmp.ne.s32.totalorder %s343, %s345
      %p352 = scmp.eq.s32.totalorder %s29, 3
      %p353 = por %p351, %p352
      %p354 = scmp.ne.s32.totalorder %s345, %s346
      %p355 = scmp.eq.s32.totalorder %s29, 0
      %p356 = por %p354, %p355
      %p357 = scmp.ne.s32.totalorder %s345, %s346
      %p358 = scmp.eq.s32.totalorder %s30, 3
      %p359 = por %p357, %p358
      %p361 = scmp.ne.s32.totalorder %s346, %s360
      %p362 = scmp.eq.s32.totalorder %s30, 0
      %p363 = por %p361, %p362
      %s365 = sadd.s32 %s364, 1
      %p368 = scmp.eq.s32.totalorder %s24, 3
      %p369 = scmp.ne.s32.totalorder %s364, %s366
      %p370 = scmp.eq.s32.totalorder %s24, 0
      %p371 = por %p369, %p370
      %p372 = scmp.ne.s32.totalorder %s364, %s366
      %p373 = scmp.eq.s32.totalorder %s29, 3
      %p374 = por %p372, %p373
      %p375 = scmp.ne.s32.totalorder %s366, %s367
      %p376 = scmp.eq.s32.totalorder %s29, 0
      %p377 = por %p375, %p376
      %p378 = scmp.ne.s32.totalorder %s366, %s367
      %p379 = scmp.eq.s32.totalorder %s30, 3
      %p380 = por %p378, %p379
      %p382 = scmp.ne.s32.totalorder %s367, %s381
      %p383 = scmp.eq.s32.totalorder %s30, 0
      %p384 = por %p382, %p383
      %s385 = smul.u32 %s33, %s32
      %s386 = smul.u32 %s42, %s46
      %s387 = ssub.s32 %s31, %s50
      %s388 = ssub.s32 %s385, %s386
      %s389 = sor.u32 %s387, %s388
      %p390 = scmp.eq.s32.totalorder %s389, 0
      %s392 = sadd.s32 %s391, 1
      %s393 = scalar_select %p390, %s391, %s392
      %p396 = pneg %p390
      %p397 = scmp.eq.s32.totalorder %s24, 3
      %p398 = por %p396, %p397
      %p399 = scmp.ne.s32.totalorder %s391, %s394
      %p400 = scmp.eq.s32.totalorder %s24, 0
      %p401 = por %p399, %p400
      %p402 = scmp.ne.s32.totalorder %s391, %s394
      %p403 = scmp.eq.s32.totalorder %s29, 3
      %p404 = por %p402, %p403
      %p405 = scmp.ne.s32.totalorder %s394, %s395
      %p406 = scmp.eq.s32.totalorder %s29, 0
      %p407 = por %p405, %p406
      %p408 = scmp.ne.s32.totalorder %s394, %s395
      %p409 = scmp.eq.s32.totalorder %s30, 3
      %p410 = por %p408, %p409
      %p412 = scmp.ne.s32.totalorder %s395, %s411
      %p413 = scmp.eq.s32.totalorder %s30, 0
      %p414 = por %p412, %p413
      %p415 = scmp.le.s32.totalorder 1, %s24
      %p416 = scmp.lt.s32.totalorder %s24, 5
      %p417 = pnand %p415, %p416
      %p418 = pneg %p417
      // Predicated region
      $region9: #{tpu_custom_call.1} parent=5 // pred_check
        _
      $region10: #{tpu_custom_call.1} parent=5 // pred_check_branch
        %420 = sbr.rel (%p417) target = $region12
      $region11: #{tpu_custom_call.1} parent=5 // pred_region
        %s421 = ssub.s32 %s24, 1
        // Predicated region
        $region13: #{tpu_custom_call.1} parent=11 // pred_check
          %p422 = pneg %p146
        $region14: #{tpu_custom_call.1} parent=11 // pred_check_branch
          %424 = sbr.rel (%p422) target = $region16
        $region15: #{tpu_custom_call.1} parent=11 // pred_region
          _
        $region16: #{tpu_custom_call.1} parent=11 // pred_fallthru
          _
        // Predicated region
        $region17: #{tpu_custom_call.1} parent=11 // pred_check
          %p425 = pneg %p167
        $region18: #{tpu_custom_call.1} parent=11 // pred_check_branch
          %427 = sbr.rel (%p425) target = $region20
        $region19: #{tpu_custom_call.1} parent=11 // pred_region
          _
        $region20: #{tpu_custom_call.1} parent=11 // pred_fallthru
          _
        // Predicated region
        $region21: #{tpu_custom_call.1} parent=11 // pred_check
          %p428 = pneg %p188
        $region22: #{tpu_custom_call.1} parent=11 // pred_check_branch
          %430 = sbr.rel (%p428) target = $region24
        $region23: #{tpu_custom_call.1} parent=11 // pred_region
          _
        $region24: #{tpu_custom_call.1} parent=11 // pred_fallthru
          _
        // Predicated region
        $region25: #{tpu_custom_call.1} parent=11 // pred_check
          %p431 = pneg %p209
        $region26: #{tpu_custom_call.1} parent=11 // pred_check_branch
          %433 = sbr.rel (%p431) target = $region28
        $region27: #{tpu_custom_call.1} parent=11 // pred_region
          _
        $region28: #{tpu_custom_call.1} parent=11 // pred_fallthru
          _
        // Predicated region
        $region29: #{tpu_custom_call.1} parent=11 // pred_check
          %p434 = pneg %p230
        $region30: #{tpu_custom_call.1} parent=11 // pred_check_branch
          %436 = sbr.rel (%p434) target = $region32
        $region31: #{tpu_custom_call.1} parent=11 // pred_region
          _
        $region32: #{tpu_custom_call.1} parent=11 // pred_fallthru
          _
        // Predicated region
        $region33: #{tpu_custom_call.1} parent=11 // pred_check
          %p437 = pneg %p251
        $region34: #{tpu_custom_call.1} parent=11 // pred_check_branch
          %439 = sbr.rel (%p437) target = $region36
        $region35: #{tpu_custom_call.1} parent=11 // pred_region
          _
        $region36: #{tpu_custom_call.1} parent=11 // pred_fallthru
          _
        // Predicated region
        $region37: #{tpu_custom_call.1} parent=11 // pred_check
          %p440 = pneg %p272
        $region38: #{tpu_custom_call.1} parent=11 // pred_check_branch
          %442 = sbr.rel (%p440) target = $region40
        $region39: #{tpu_custom_call.1} parent=11 // pred_region
          _
        $region40: #{tpu_custom_call.1} parent=11 // pred_fallthru
          _
        // Predicated region
        $region41: #{tpu_custom_call.1} parent=11 // pred_check
          %p443 = pneg %p293
        $region42: #{tpu_custom_call.1} parent=11 // pred_check_branch
          %445 = sbr.rel (%p443) target = $region44
        $region43: #{tpu_custom_call.1} parent=11 // pred_region
          _
        $region44: #{tpu_custom_call.1} parent=11 // pred_fallthru
          _
        // Predicated region
        $region45: #{tpu_custom_call.1} parent=11 // pred_check
          %p446 = pneg %p314
        $region46: #{tpu_custom_call.1} parent=11 // pred_check_branch
          %448 = sbr.rel (%p446) target = $region48
        $region47: #{tpu_custom_call.1} parent=11 // pred_region
          _
        $region48: #{tpu_custom_call.1} parent=11 // pred_fallthru
          _
        // Predicated region
        $region49: #{tpu_custom_call.1} parent=11 // pred_check
          %p449 = pneg %p335
        $region50: #{tpu_custom_call.1} parent=11 // pred_check_branch
          %451 = sbr.rel (%p449) target = $region52
        $region51: #{tpu_custom_call.1} parent=11 // pred_region
          _
        $region52: #{tpu_custom_call.1} parent=11 // pred_fallthru
          _
        // Predicated region
        $region53: #{tpu_custom_call.1} parent=11 // pred_check
          %p452 = pneg %p356
        $region54: #{tpu_custom_call.1} parent=11 // pred_check_branch
          %454 = sbr.rel (%p452) target = $region56
        $region55: #{tpu_custom_call.1} parent=11 // pred_region
          _
        $region56: #{tpu_custom_call.1} parent=11 // pred_fallthru
          _
        // Predicated region
        $region57: #{tpu_custom_call.1} parent=11 // pred_check
          %p455 = pneg %p377
        $region58: #{tpu_custom_call.1} parent=11 // pred_check_branch
          %457 = sbr.rel (%p455) target = $region60
        $region59: #{tpu_custom_call.1} parent=11 // pred_region
          _
        $region60: #{tpu_custom_call.1} parent=11 // pred_fallthru
          _
      $region12: #{tpu_custom_call.1} parent=5 // pred_fallthru
        _
      %p458 = scmp.lt.s32.totalorder %s24, 4
      // Predicated region
      $region61: #{tpu_custom_call.1} parent=5 // pred_check
        %p459 = pneg %p458
      $region62: #{tpu_custom_call.1} parent=5 // pred_check_branch
        %461 = sbr.rel (%p459) target = $region64
      $region63: #{tpu_custom_call.1} parent=5 // pred_region
        // Predicated region
        $region65: #{tpu_custom_call.1} parent=63 // pred_check
          %p462 = pneg %p65
        $region66: #{tpu_custom_call.1} parent=63 // pred_check_branch
          %464 = sbr.rel (%p462) target = $region68
        $region67: #{tpu_custom_call.1} parent=63 // pred_region
          %s465 = smul.u32 2, %s33
          %p466 = scmp.lt.s32.totalorder %s31, 1
          %s467 = scalar_select %p466, %s31, 1
          %p468 = scmp.lt.s32.totalorder %s465, 1
          %s469 = scalar_select %p468, %s465, 1
          %s470 = smul.addr %s467, 4
          %s471 = sadd.s32 %s469, %s470
          %s472 = smul.addr %s471, 4
          %s473 = scalar_lea.vmem %s0, %s472
          %s474 = smul.u32 2, %s33
        $region68: #{tpu_custom_call.1} parent=63 // pred_fallthru
          _
        // Predicated region
        $region69: #{tpu_custom_call.1} parent=63 // pred_check
          %p475 = pneg %p93
        $region70: #{tpu_custom_call.1} parent=63 // pred_check_branch
          %477 = sbr.rel (%p475) target = $region72
        $region71: #{tpu_custom_call.1} parent=63 // pred_region
          %s478 = smul.u32 2, %s33
          %p479 = scmp.lt.s32.totalorder %s31, 1
          %s480 = scalar_select %p479, %s31, 1
          %p481 = scmp.lt.s32.totalorder %s478, 1
          %s482 = scalar_select %p481, %s478, 1
          %s483 = smul.addr %s480, 4
          %s484 = sadd.s32 %s482, %s483
          %s485 = smul.addr %s484, 4
          %s486 = scalar_lea.vmem %s1, %s485
          %s487 = smul.u32 2, %s33
        $region72: #{tpu_custom_call.1} parent=63 // pred_fallthru
          _
        // Predicated region
        $region73: #{tpu_custom_call.1} parent=63 // pred_check
          %p488 = pneg %p119
        $region74: #{tpu_custom_call.1} parent=63 // pred_check_branch
          %490 = sbr.rel (%p488) target = $region76
        $region75: #{tpu_custom_call.1} parent=63 // pred_region
          %p491 = scmp.lt.s32.totalorder %s31, 1
          %s492 = scalar_select %p491, %s31, 1
          %s493 = smul.addr %s492, 2
          %s494 = smul.addr %s493, 8
          %s495 = scalar_lea.vmem %s2, %s494
        $region76: #{tpu_custom_call.1} parent=63 // pred_fallthru
          _
      $region64: #{tpu_custom_call.1} parent=5 // pred_fallthru
        _
      %p496 = scmp.le.s32.totalorder 1, %s24
      %p497 = scmp.lt.s32.totalorder %s24, 5
      %p498 = pnand %p496, %p497
      %p499 = pneg %p498
      // Predicated region
      $region77: #{tpu_custom_call.1} parent=5 // pred_check
        _
      $region78: #{tpu_custom_call.1} parent=5 // pred_check_branch
        %501 = sbr.rel (%p498) target = $region80
      $region79: #{tpu_custom_call.1} parent=5 // pred_region
        %s502 = ssub.s32 %s24, 1
        %s503 = smul.u32 2, %s36
        %p504 = scmp.lt.s32.totalorder %s34, 1
        %s505 = scalar_select %p504, %s34, 1
        %p506 = scmp.lt.s32.totalorder %s503, 1
        %s507 = scalar_select %p506, %s503, 1
        %s508 = smul.addr %s505, 4
        %s509 = sadd.s32 %s507, %s508
        %s510 = smul.addr %s509, 4
        %s511 = scalar_lea.vmem %s0, %s510
        %p512 = pneg %p71
        %p513 = pneg %p68
        %s514 = smul.u32 2, %s36
        %p515 = scmp.lt.s32.totalorder %s34, 1
        %s516 = scalar_select %p515, %s34, 1
        %p517 = scmp.lt.s32.totalorder %s514, 1
        %s518 = scalar_select %p517, %s514, 1
        %s519 = smul.addr %s516, 4
        %s520 = sadd.s32 %s518, %s519
        %s521 = smul.addr %s520, 4
        %s522 = scalar_lea.vmem %s1, %s521
        %p523 = pneg %p99
        %p524 = pneg %p96
        %p525 = scmp.lt.s32.totalorder %s34, 1
        %s526 = scalar_select %p525, %s34, 1
        %s527 = smul.addr %s526, 2
        %s528 = smul.addr %s527, 8
        %s529 = scalar_lea.vmem %s2, %s528
        %p530 = pneg %p125
        %p531 = pneg %p122
        %p532 = pneg %p146
        %p533 = pneg %p143
        %p534 = pneg %p167
        %p535 = pneg %p164
        %p536 = pneg %p188
        %p537 = pneg %p185
        %p538 = pneg %p209
        %p539 = pneg %p206
        %p540 = pneg %p230
        %p541 = pneg %p227
        %p542 = pneg %p251
        %p543 = pneg %p248
        %p544 = pneg %p272
        %p545 = pneg %p269
        %p546 = pneg %p293
        %p547 = pneg %p290
        %p548 = pneg %p314
        %p549 = pneg %p311
        %p550 = pneg %p335
        %p551 = pneg %p332
        %p552 = pneg %p356
        %p553 = pneg %p353
        %p554 = pneg %p377
        %p555 = pneg %p374
        %p556 = pneg %p407
        %p557 = pneg %p404
        %s558 = sand.u32 %s394, 1
        %s559 = scalar_lea.sflag [#allocation5], %s558
        %s560 = sand.u32 %s394, 1
        %s561 = smul.addr %s560, 32
        %s562 = scalar_lea.vmem [#allocation4], %s561
        %s563 = smul.u32 2, %s36
        %p564 = scmp.lt.s32.totalorder %s34, 1
        %s565 = scalar_select %p564, %s34, 1
        %p566 = scmp.lt.s32.totalorder %s563, 1
        %s567 = scalar_select %p566, %s563, 1
        %s568 = smul.addr %s565, 4
        %s569 = sadd.s32 %s567, %s568
        %s570 = smul.addr %s569, 4
        %s571 = scalar_lea.vmem %s0, %s570
        %s572 = smul.u32 2, %s36
        %s573 = smul.u32 2, %s36
        %p574 = scmp.lt.s32.totalorder %s34, 1
        %s575 = scalar_select %p574, %s34, 1
        %p576 = scmp.lt.s32.totalorder %s573, 1
        %s577 = scalar_select %p576, %s573, 1
        %s578 = smul.addr %s575, 4
        %s579 = sadd.s32 %s577, %s578
        %s580 = smul.addr %s579, 4
        %s581 = scalar_lea.vmem %s1, %s580
        %s582 = smul.u32 2, %s36
        %p583 = scmp.lt.s32.totalorder %s34, 1
        %s584 = scalar_select %p583, %s34, 1
        %s585 = smul.addr %s584, 2
        %s586 = smul.addr %s585, 8
        %s587 = scalar_lea.vmem %s2, %s586
        %s588 = smul.u32 %s36, %s35
        %s589 = smul.u32 2, %s588
        %v591 = vld [vmem:[%s571] sm:$0xff]
        %v592 = vld [vmem:[%s571 + $0x8] sm:$0xff]
        %v593 = vunpack.c.l.bf16 %v591
        %v594 = vunpack.c.h.bf16 %v591
        %v595 = vunpack.c.l.bf16 %v592
        %v596 = vunpack.c.h.bf16 %v592
        %v597 = vld [vmem:[%s581] sm:$0xff]
        %v598 = vld [vmem:[%s581 + $0x8] sm:$0xff]
        %v599 = vunpack.c.l.bf16 %v597
        %v600 = vunpack.c.h.bf16 %v597
        %v601 = vunpack.c.l.bf16 %v598
        %v602 = vunpack.c.h.bf16 %v598
        %v603 = vadd.f32 %v593, %v599
        %v604 = vadd.f32 %v594, %v600
        %v605 = vadd.f32 %v595, %v601
        %v606 = vadd.f32 %v596, %v602
        %v607 = vld [vmem:[%s3] sm:$0x3]
        %v608 = vpack.c.bf16 %v605, %v603
        %v609 = vpack.c.bf16 %v606, %v604
        %v610 = vld [vmem:[%s4] sm:$0xf]
        %612 = vset.pattern.permute.xlu0 0
        %613 = vperm.xlu0 %612, %v610
        %v614 = vpop.permute.xlu0 %613
        %vm616 = vcmask 130048
        %v618 = vsel %vm616, %v607, 0
        %620 = vmatprep.subr.bf16.mxu0 %v609
        %621 = vmatpush1.bf16.msra.mxu0 %v608
        %622 = vmatprep.subr.bf16.mxu0 0
        %623 = vmatpush1.bf16.msra.mxu0 0
        %624 = vmatprep.subr.bf16.mxu0 0
        %625 = vmatpush1.bf16.msra.mxu0 0
        %626 = vmatprep.subr.bf16.mxu0 0
        %627 = vmatpush1.bf16.msra.mxu0 0
        %628 = vmatprep.subr.bf16.mxu0 0
        %629 = vmatpush1.bf16.msra.mxu0 0
        %630 = vmatprep.subr.bf16.mxu0 0
        %631 = vmatpush1.bf16.msra.mxu0 0
        %632 = vmatprep.subr.bf16.mxu0 0
        %633 = vmatpush1.bf16.msra.mxu0 0
        %634 = vmatprep.subr.bf16.mxu0 0
        %635 = vmatpush1.bf16.msra.mxu0 0
        %636 = vmatprep.subr.bf16.mxu0 0
        %637 = vmatpush1.bf16.msra.mxu0 0
        %638 = vmatprep.subr.bf16.mxu0 0
        %639 = vmatpush1.bf16.msra.mxu0 0
        %640 = vmatprep.subr.bf16.mxu0 0
        %641 = vmatpush1.bf16.msra.mxu0 0
        %642 = vmatprep.subr.bf16.mxu0 0
        %643 = vmatpush1.bf16.msra.mxu0 0
        %644 = vmatprep.subr.bf16.mxu0 0
        %645 = vmatpush1.bf16.msra.mxu0 0
        %646 = vmatprep.subr.bf16.mxu0 0
        %647 = vmatpush1.bf16.msra.mxu0 0
        %648 = vmatprep.subr.bf16.mxu0 0
        %649 = vmatpush1.bf16.msra.mxu0 0
        %650 = vmatprep.subr.bf16.mxu0 0
        %651 = vmatpush1.bf16.msra.mxu0 0
        %652 = vmatprep.mubr.bf16.mxu0 0
        %653 = vmatmul.mubr.bf16.gmra.mrb[0].mxu0 %v618
        %v654 = vpop.f32.mrb[0].mxu0
        %v655 = vadd.f32 %v614, %v654
        %v656 = vpop.f32.mrb[0].mxu0
        %v657 = vadd.f32 %v614, %v656
        %v658 = vpop.f32.mrb[0].mxu0
        %v659 = vpop.f32.mrb[0].mxu0
        %660 = vdwg.mxu0
        %v661 = vmax.f32 %v655, 0.0
        %v662 = vmax.f32 %v657, 0.0
        %v663 = vld [vmem:[%s5] sm:$0xf]
        %v664 = vld [vmem:[%s5 + $0x4] sm:$0xf]
        %v665 = vpack.c.bf16 %v661, %v661
        %v666 = vpack.c.bf16 %v662, %v662
        %v667 = vld [vmem:[%s6] sm:$0xff]
        %v668 = vld [vmem:[%s6 + $0x8] sm:$0xff]
        %670 = vset.pattern.permute.xlu0 0
        %671 = vperm.xlu0 %670, %v667
        %v672 = vpop.permute.xlu0 %671
        %675 = vset.pattern.permute.xlu0 0
        %676 = vperm.xlu0 %675, %v668
        %v677 = vpop.permute.xlu0 %676
        %v681 = vunpack.c.l.b16 %v663
        %v682 = vunpack.c.l.b16 %v664
        %v683 = vpack.c.b16 %v682, %v681
        %vm684 = vcmask 31744
        %v686 = vsel %vm684, %v683, 0
        %vm688 = vcmask 1041408
        %v690 = vsel %vm688, %v665, 0
        %v693 = vsel %vm688, %v666, 0
        %695 = vmatprep.subr.bf16.mxu0 %v693
        %696 = vmatpush1.bf16.msra.mxu0 %v690
        %697 = vmatprep.subr.bf16.mxu0 0
        %698 = vmatpush1.bf16.msra.mxu0 0
        %699 = vmatprep.subr.bf16.mxu0 0
        %700 = vmatpush1.bf16.msra.mxu0 0
        %701 = vmatprep.subr.bf16.mxu0 0
        %702 = vmatpush1.bf16.msra.mxu0 0
        %703 = vmatprep.subr.bf16.mxu0 0
        %704 = vmatpush1.bf16.msra.mxu0 0
        %705 = vmatprep.subr.bf16.mxu0 0
        %706 = vmatpush1.bf16.msra.mxu0 0
        %707 = vmatprep.subr.bf16.mxu0 0
        %708 = vmatpush1.bf16.msra.mxu0 0
        %709 = vmatprep.subr.bf16.mxu0 0
        %710 = vmatpush1.bf16.msra.mxu0 0
        %711 = vmatprep.subr.bf16.mxu0 0
        %712 = vmatpush1.bf16.msra.mxu0 0
        %713 = vmatprep.subr.bf16.mxu0 0
        %714 = vmatpush1.bf16.msra.mxu0 0
        %715 = vmatprep.subr.bf16.mxu0 0
        %716 = vmatpush1.bf16.msra.mxu0 0
        %717 = vmatprep.subr.bf16.mxu0 0
        %718 = vmatpush1.bf16.msra.mxu0 0
        %719 = vmatprep.subr.bf16.mxu0 0
        %720 = vmatpush1.bf16.msra.mxu0 0
        %721 = vmatprep.subr.bf16.mxu0 0
        %722 = vmatpush1.bf16.msra.mxu0 0
        %723 = vmatprep.subr.bf16.mxu0 0
        %724 = vmatpush1.bf16.msra.mxu0 0
        %725 = vmatprep.subr.bf16.mxu0 0
        %726 = vmatpush1.bf16.msra.mxu0 0
        %727 = vmatprep.mubr.bf16.mxu0 0
        %728 = vmatmul.mubr.bf16.gmra.mrb[0].mxu0 %v686
        %v729 = vpop.f32.mrb[0].mxu0
        %v730 = vadd.f32 %v672, %v729
        %v731 = vpop.f32.mrb[0].mxu0
        %v732 = vadd.f32 %v672, %v731
        %v733 = vpop.f32.mrb[0].mxu0
        %v734 = vadd.f32 %v677, %v733
        %v735 = vpop.f32.mrb[0].mxu0
        %v736 = vadd.f32 %v677, %v735
        %737 = vdwg.mxu0
        %v738 = vld [vmem:[%s587] sm:$0xff]
        %v739 = vld [vmem:[%s587 + $0x8] sm:$0xff]
        %741 = vset.pattern.permute.xlu0 0
        %742 = vperm.xlu0 %741, %v738
        %v743 = vpop.permute.xlu0 %742
        %746 = vset.pattern.permute.xlu0 0
        %747 = vperm.xlu0 %746, %v739
        %v748 = vpop.permute.xlu0 %747
        %v750 = vadd.f32 %v730, %v743
        %v751 = vadd.f32 %v732, %v743
        %v752 = vadd.f32 %v734, %v748
        %v753 = vadd.f32 %v736, %v748
        %v754 = vxor.u32 %v750, 2147483648
        %v755 = vxor.u32 %v751, 2147483648
        %v756 = vxor.u32 %v752, 2147483648
        %v757 = vxor.u32 %v753, 2147483648
        %v758 = vmul.f32 %v754, 1.442695
        %v759 = vpow.pop %v758
        %v760 = vmul.f32 %v755, 1.442695
        %v761 = vpow.pop %v760
        %v762 = vmul.f32 %v756, 1.442695
        %v763 = vpow.pop %v762
        %v764 = vmul.f32 %v757, 1.442695
        %v765 = vpow.pop %v764
        %v766 = vadd.f32 %v759, 1.0
        %v767 = vadd.f32 %v761, 1.0
        %v768 = vadd.f32 %v763, 1.0
        %v769 = vadd.f32 %v765, 1.0
        %v770 = vrcp.pop %v766
        %v771 = vmul.f32 1.0, %v770
        %v772 = vrcp.pop %v767
        %v773 = vmul.f32 1.0, %v772
        %v774 = vrcp.pop %v768
        %v775 = vmul.f32 1.0, %v774
        %v776 = vrcp.pop %v769
        %v777 = vmul.f32 1.0, %v776
        %v778 = vsub.f32 %v593, %v599
        %v779 = vsub.f32 %v594, %v600
        %v780 = vsub.f32 %v595, %v601
        %v781 = vsub.f32 %v596, %v602
        %v782 = vmul.f32 %v778, %v771
        %v783 = vmul.f32 %v779, %v773
        %v784 = vmul.f32 %v780, %v775
        %v785 = vmul.f32 %v781, %v777
        %v786 = vadd.f32 %v599, %v782
        %v787 = vadd.f32 %v600, %v783
        %v788 = vadd.f32 %v601, %v784
        %v789 = vadd.f32 %v602, %v785
        %v790 = vadd.f32 %v786, %v787
        %791 = vadd.xlane.f32.xlu0 %v790
        %v792 = vpop.xlane.xlu0 %791
        %v793 = vadd.f32 %v788, %v789
        %794 = vadd.xlane.f32.xlu0 %v793
        %v795 = vpop.xlane.xlu0 %794
        %p796 = scmp.eq.s32.totalorder %s35, 0
        %p797 = scmp.eq.s32.totalorder %s36, 0
        %p798 = pnand %p796, %p797
        %p799 = pneg %p798
        // Predicated region
        $region81: #{tpu_custom_call.1} parent=79 // pred_check
          _
        $region82: #{tpu_custom_call.1} parent=79 // pred_check_branch
          %801 = sbr.rel (%p798) target = $region84
        $region83: #{tpu_custom_call.1} parent=79 // pred_region
          %vm802 = vcmask 7168
          %803 = vst.msk [vmem:[#allocation2] sm:$0xff] %vm802, %v792
          %804 = vst.msk [vmem:[#allocation2 + $0x8] sm:$0xff] %vm802, %v795
        $region84: #{tpu_custom_call.1} parent=79 // pred_fallthru
          _
        %p805 = scmp.gt.s32.totalorder %s36, 0
        %p806 = pnand %p796, %p805
        %p807 = pneg %p806
        // Predicated region
        $region85: #{tpu_custom_call.1} parent=79 // pred_check
          _
        $region86: #{tpu_custom_call.1} parent=79 // pred_check_branch
          %809 = sbr.rel (%p806) target = $region88
        $region87: #{tpu_custom_call.1} parent=79 // pred_region
          %v810 = vld [vmem:[#allocation2] sm:$0xff]
          %v811 = vld [vmem:[#allocation2 + $0x8] sm:$0xff]
          %v812 = vadd.f32 %v810, %v792
          %v813 = vadd.f32 %v811, %v795
          %vm814 = vcmask 7168
          %815 = vst.msk [vmem:[#allocation2] sm:$0xff] %vm814, %v812
          %816 = vst.msk [vmem:[#allocation2 + $0x8] sm:$0xff] %vm814, %v813
        $region88: #{tpu_custom_call.1} parent=79 // pred_fallthru
          _
        // Predicated region
        $region89: #{tpu_custom_call.1} parent=79 // pred_check
          _
        $region90: #{tpu_custom_call.1} parent=79 // pred_check_branch
          %818 = sbr.rel (%p798) target = $region92
        $region91: #{tpu_custom_call.1} parent=79 // pred_region
          %v819 = vld [vmem:[#allocation2] sm:$0xff]
          %v820 = vld [vmem:[#allocation2 + $0x8] sm:$0xff]
          %v821 = vmul.f32 %v819, 0.00390625
          %v822 = vmul.f32 %v820, 0.00390625
          %v823 = vld [vmem:[%s7] sm:$0x3]
          %v824 = vunpack.c.l.bf16 %v823
          %v825 = vld [vmem:[%s8] sm:$0xf]
          %v827 = vsel %vm616, %v824, 0
          %829 = vmatprep.subr.mxu0 0.0
          %830 = vmatpush1.msra.mxu0 %v821
          %831 = vmatprep.subr.mxu0 0.0
          %832 = vmatpush1.msra.mxu0 %v822
          %833 = vmatprep.subr.mxu0 0.0
          %834 = vmatpush1.msra.mxu0 0.0
          %835 = vmatprep.subr.mxu0 0.0
          %836 = vmatpush1.msra.mxu0 0.0
          %837 = vmatprep.subr.mxu0 0.0
          %838 = vmatpush1.msra.mxu0 0.0
          %839 = vmatprep.subr.mxu0 0.0
          %840 = vmatpush1.msra.mxu0 0.0
          %841 = vmatprep.subr.mxu0 0.0
          %842 = vmatpush1.msra.mxu0 0.0
          %843 = vmatprep.subr.mxu0 0.0
          %844 = vmatpush1.msra.mxu0 0.0
          %845 = vmatprep.subr.mxu0 0.0
          %846 = vmatpush1.msra.mxu0 0.0
          %847 = vmatprep.subr.mxu0 0.0
          %848 = vmatpush1.msra.mxu0 0.0
          %849 = vmatprep.subr.mxu0 0.0
          %850 = vmatpush1.msra.mxu0 0.0
          %851 = vmatprep.subr.mxu0 0.0
          %852 = vmatpush1.msra.mxu0 0.0
          %853 = vmatprep.subr.mxu0 0.0
          %854 = vmatpush1.msra.mxu0 0.0
          %855 = vmatprep.subr.mxu0 0.0
          %856 = vmatpush1.msra.mxu0 0.0
          %857 = vmatprep.subr.mxu0 0.0
          %858 = vmatpush1.msra.mxu0 0.0
          %859 = vmatprep.subr.mxu0 0.0
          %860 = vmatpush1.msra.mxu0 0.0
          %861 = vmatprep.subr.mxu0 0.0
          %862 = vmatpush1.msra.mxu0 0.0
          %863 = vmatprep.subr.mxu0 0.0
          %864 = vmatpush1.msra.mxu0 0.0
          %865 = vmatprep.subr.mxu0 0.0
          %866 = vmatpush1.msra.mxu0 0.0
          %867 = vmatprep.subr.mxu0 0.0
          %868 = vmatpush1.msra.mxu0 0.0
          %869 = vmatprep.subr.mxu0 0.0
          %870 = vmatpush1.msra.mxu0 0.0
          %871 = vmatprep.subr.mxu0 0.0
          %872 = vmatpush1.msra.mxu0 0.0
          %873 = vmatprep.subr.mxu0 0.0
          %874 = vmatpush1.msra.mxu0 0.0
          %875 = vmatprep.subr.mxu0 0.0
          %876 = vmatpush1.msra.mxu0 0.0
          %877 = vmatprep.subr.mxu0 0.0
          %878 = vmatpush1.msra.mxu0 0.0
          %879 = vmatprep.subr.mxu0 0.0
          %880 = vmatpush1.msra.mxu0 0.0
          %881 = vmatprep.subr.mxu0 0.0
          %882 = vmatpush1.msra.mxu0 0.0
          %883 = vmatprep.subr.mxu0 0.0
          %884 = vmatpush1.msra.mxu0 0.0
          %885 = vmatprep.subr.mxu0 0.0
          %886 = vmatpush1.msra.mxu0 0.0
          %887 = vmatprep.subr.mxu0 0.0
          %888 = vmatpush1.msra.mxu0 0.0
          %889 = vmatprep.subr.mxu0 0.0
          %890 = vmatpush1.msra.mxu0 0.0
          %891 = vmatprep.subr.mxu0 0.0
          %892 = vmatpush1.msra.mxu0 0.0
          %893 = vmatprep.mubr.f32.mxu0 0.0
          %894 = vmatmul.mubr.f32.gmra.mrb[0].mxu0 %v827
          %v895 = vpop.f32.mrb[0].mxu0
          %v896 = vadd.f32 %v825, %v895
          %v897 = vpop.f32.mrb[0].mxu0
          %898 = vdwg.mxu0
          %v899 = vmax.f32 %v896, 0.0
          %v900 = vld [vmem:[%s9] sm:$0xf]
          %v901 = vld [vmem:[%s9 + $0x4] sm:$0xf]
          %v902 = vunpack.c.l.bf16 %v900
          %v903 = vunpack.c.l.bf16 %v901
          %v904 = vld [vmem:[%s10] sm:$0xff]
          %v905 = vld [vmem:[%s10 + $0x8] sm:$0xff]
          %v907 = vsel %vm684, %v902, 0
          %v910 = vsel %vm684, %v903, 0
          %vm912 = vcmask 1043456
          %v914 = vsel %vm912, %v899, 0
          %916 = vmatprep.subr.mxu0 0.0
          %917 = vmatpush1.msra.mxu0 %v914
          %918 = vmatprep.subr.mxu0 0.0
          %919 = vmatpush1.msra.mxu0 0.0
          %920 = vmatprep.subr.mxu0 0.0
          %921 = vmatpush1.msra.mxu0 0.0
          %922 = vmatprep.subr.mxu0 0.0
          %923 = vmatpush1.msra.mxu0 0.0
          %924 = vmatprep.subr.mxu0 0.0
          %925 = vmatpush1.msra.mxu0 0.0
          %926 = vmatprep.subr.mxu0 0.0
          %927 = vmatpush1.msra.mxu0 0.0
          %928 = vmatprep.subr.mxu0 0.0
          %929 = vmatpush1.msra.mxu0 0.0
          %930 = vmatprep.subr.mxu0 0.0
          %931 = vmatpush1.msra.mxu0 0.0
          %932 = vmatprep.subr.mxu0 0.0
          %933 = vmatpush1.msra.mxu0 0.0
          %934 = vmatprep.subr.mxu0 0.0
          %935 = vmatpush1.msra.mxu0 0.0
          %936 = vmatprep.subr.mxu0 0.0
          %937 = vmatpush1.msra.mxu0 0.0
          %938 = vmatprep.subr.mxu0 0.0
          %939 = vmatpush1.msra.mxu0 0.0
          %940 = vmatprep.subr.mxu0 0.0
          %941 = vmatpush1.msra.mxu0 0.0
          %942 = vmatprep.subr.mxu0 0.0
          %943 = vmatpush1.msra.mxu0 0.0
          %944 = vmatprep.subr.mxu0 0.0
          %945 = vmatpush1.msra.mxu0 0.0
          %946 = vmatprep.subr.mxu0 0.0
          %947 = vmatpush1.msra.mxu0 0.0
          %948 = vmatprep.subr.mxu0 0.0
          %949 = vmatpush1.msra.mxu0 0.0
          %950 = vmatprep.subr.mxu0 0.0
          %951 = vmatpush1.msra.mxu0 0.0
          %952 = vmatprep.subr.mxu0 0.0
          %953 = vmatpush1.msra.mxu0 0.0
          %954 = vmatprep.subr.mxu0 0.0
          %955 = vmatpush1.msra.mxu0 0.0
          %956 = vmatprep.subr.mxu0 0.0
          %957 = vmatpush1.msra.mxu0 0.0
          %958 = vmatprep.subr.mxu0 0.0
          %959 = vmatpush1.msra.mxu0 0.0
          %960 = vmatprep.subr.mxu0 0.0
          %961 = vmatpush1.msra.mxu0 0.0
          %962 = vmatprep.subr.mxu0 0.0
          %963 = vmatpush1.msra.mxu0 0.0
          %964 = vmatprep.subr.mxu0 0.0
          %965 = vmatpush1.msra.mxu0 0.0
          %966 = vmatprep.subr.mxu0 0.0
          %967 = vmatpush1.msra.mxu0 0.0
          %968 = vmatprep.subr.mxu0 0.0
          %969 = vmatpush1.msra.mxu0 0.0
          %970 = vmatprep.subr.mxu0 0.0
          %971 = vmatpush1.msra.mxu0 0.0
          %972 = vmatprep.subr.mxu0 0.0
          %973 = vmatpush1.msra.mxu0 0.0
          %974 = vmatprep.subr.mxu0 0.0
          %975 = vmatpush1.msra.mxu0 0.0
          %976 = vmatprep.subr.mxu0 0.0
          %977 = vmatpush1.msra.mxu0 0.0
          %978 = vmatprep.subr.mxu0 0.0
          %979 = vmatpush1.msra.mxu0 0.0
          %980 = vmatprep.mubr.f32.mxu0 0.0
          %981 = vmatmul.mubr.f32.gmra.mrb[0].mxu0 %v907
          %v982 = vpop.f32.mrb[0].mxu0
          %v983 = vadd.f32 %v904, %v982
          %v984 = vpop.f32.mrb[0].mxu0
          %985 = vmatprep.mubr.f32.mxu0 0.0
          %986 = vmatmul.mubr.f32.gmra.mrb[0].mxu0 %v910
          %v987 = vpop.f32.mrb[0].mxu0
          %v988 = vadd.f32 %v905, %v987
          %v989 = vpop.f32.mrb[0].mxu0
          %990 = vdwg.mxu0
          %vm991 = vcmask 7168
          %992 = vst.msk [vmem:[#allocation3] sm:$0xff] %vm991, %v983
          %993 = vst.msk [vmem:[#allocation3 + $0x8] sm:$0xff] %vm991, %v988
        $region92: #{tpu_custom_call.1} parent=79 // pred_fallthru
          _
        %p994 = scmp.eq.s32.totalorder %s35, 1
        // Predicated region
        $region93: #{tpu_custom_call.1} parent=79 // pred_check
          %p995 = pneg %p994
        $region94: #{tpu_custom_call.1} parent=79 // pred_check_branch
          %997 = sbr.rel (%p995) target = $region96
        $region95: #{tpu_custom_call.1} parent=79 // pred_region
          %v998 = vld [vmem:[%s11] sm:$0x3]
          %v999 = vpack.c.bf16 %v788, %v786
          %v1000 = vpack.c.bf16 %v789, %v787
          %v1001 = vld [vmem:[%s12] sm:$0xf]
          %1003 = vset.pattern.permute.xlu0 0
          %1004 = vperm.xlu0 %1003, %v1001
          %v1005 = vpop.permute.xlu0 %1004
          %v1008 = vsel %vm616, %v998, 0
          %1010 = vmatprep.subr.bf16.mxu0 %v1000
          %1011 = vmatpush1.bf16.msra.mxu0 %v999
          %1012 = vmatprep.subr.bf16.mxu0 0
          %1013 = vmatpush1.bf16.msra.mxu0 0
          %1014 = vmatprep.subr.bf16.mxu0 0
          %1015 = vmatpush1.bf16.msra.mxu0 0
          %1016 = vmatprep.subr.bf16.mxu0 0
          %1017 = vmatpush1.bf16.msra.mxu0 0
          %1018 = vmatprep.subr.bf16.mxu0 0
          %1019 = vmatpush1.bf16.msra.mxu0 0
          %1020 = vmatprep.subr.bf16.mxu0 0
          %1021 = vmatpush1.bf16.msra.mxu0 0
          %1022 = vmatprep.subr.bf16.mxu0 0
          %1023 = vmatpush1.bf16.msra.mxu0 0
          %1024 = vmatprep.subr.bf16.mxu0 0
          %1025 = vmatpush1.bf16.msra.mxu0 0
          %1026 = vmatprep.subr.bf16.mxu0 0
          %1027 = vmatpush1.bf16.msra.mxu0 0
          %1028 = vmatprep.subr.bf16.mxu0 0
          %1029 = vmatpush1.bf16.msra.mxu0 0
          %1030 = vmatprep.subr.bf16.mxu0 0
          %1031 = vmatpush1.bf16.msra.mxu0 0
          %1032 = vmatprep.subr.bf16.mxu0 0
          %1033 = vmatpush1.bf16.msra.mxu0 0
          %1034 = vmatprep.subr.bf16.mxu0 0
          %1035 = vmatpush1.bf16.msra.mxu0 0
          %1036 = vmatprep.subr.bf16.mxu0 0
          %1037 = vmatpush1.bf16.msra.mxu0 0
          %1038 = vmatprep.subr.bf16.mxu0 0
          %1039 = vmatpush1.bf16.msra.mxu0 0
          %1040 = vmatprep.subr.bf16.mxu0 0
          %1041 = vmatpush1.bf16.msra.mxu0 0
          %1042 = vmatprep.mubr.bf16.mxu0 0
          %1043 = vmatmul.mubr.bf16.gmra.mrb[0].mxu0 %v1008
          %v1044 = vpop.f32.mrb[0].mxu0
          %v1045 = vadd.f32 %v1005, %v1044
          %v1046 = vpop.f32.mrb[0].mxu0
          %v1047 = vadd.f32 %v1005, %v1046
          %v1048 = vpop.f32.mrb[0].mxu0
          %v1049 = vpop.f32.mrb[0].mxu0
          %1050 = vdwg.mxu0
          %v1051 = vmax.f32 %v1045, 0.0
          %v1052 = vmax.f32 %v1047, 0.0
          %v1053 = vld [vmem:[%s13] sm:$0xf]
          %v1054 = vld [vmem:[%s13 + $0x4] sm:$0xf]
          %v1055 = vpack.c.bf16 %v1051, %v1051
          %v1056 = vpack.c.bf16 %v1052, %v1052
          %v1057 = vld [vmem:[%s14] sm:$0xff]
          %v1058 = vld [vmem:[%s14 + $0x8] sm:$0xff]
          %1060 = vset.pattern.permute.xlu0 0
          %1061 = vperm.xlu0 %1060, %v1057
          %v1062 = vpop.permute.xlu0 %1061
          %1065 = vset.pattern.permute.xlu0 0
          %1066 = vperm.xlu0 %1065, %v1058
          %v1067 = vpop.permute.xlu0 %1066
          %v1071 = vunpack.c.l.b16 %v1053
          %v1072 = vunpack.c.l.b16 %v1054
          %v1073 = vpack.c.b16 %v1072, %v1071
          %v1075 = vsel %vm684, %v1073, 0
          %v1078 = vsel %vm688, %v1055, 0
          %v1081 = vsel %vm688, %v1056, 0
          %1083 = vmatprep.subr.bf16.mxu0 %v1081
          %1084 = vmatpush1.bf16.msra.mxu0 %v1078
          %1085 = vmatprep.subr.bf16.mxu0 0
          %1086 = vmatpush1.bf16.msra.mxu0 0
          %1087 = vmatprep.subr.bf16.mxu0 0
          %1088 = vmatpush1.bf16.msra.mxu0 0
          %1089 = vmatprep.subr.bf16.mxu0 0
          %1090 = vmatpush1.bf16.msra.mxu0 0
          %1091 = vmatprep.subr.bf16.mxu0 0
          %1092 = vmatpush1.bf16.msra.mxu0 0
          %1093 = vmatprep.subr.bf16.mxu0 0
          %1094 = vmatpush1.bf16.msra.mxu0 0
          %1095 = vmatprep.subr.bf16.mxu0 0
          %1096 = vmatpush1.bf16.msra.mxu0 0
          %1097 = vmatprep.subr.bf16.mxu0 0
          %1098 = vmatpush1.bf16.msra.mxu0 0
          %1099 = vmatprep.subr.bf16.mxu0 0
          %1100 = vmatpush1.bf16.msra.mxu0 0
          %1101 = vmatprep.subr.bf16.mxu0 0
          %1102 = vmatpush1.bf16.msra.mxu0 0
          %1103 = vmatprep.subr.bf16.mxu0 0
          %1104 = vmatpush1.bf16.msra.mxu0 0
          %1105 = vmatprep.subr.bf16.mxu0 0
          %1106 = vmatpush1.bf16.msra.mxu0 0
          %1107 = vmatprep.subr.bf16.mxu0 0
          %1108 = vmatpush1.bf16.msra.mxu0 0
          %1109 = vmatprep.subr.bf16.mxu0 0
          %1110 = vmatpush1.bf16.msra.mxu0 0
          %1111 = vmatprep.subr.bf16.mxu0 0
          %1112 = vmatpush1.bf16.msra.mxu0 0
          %1113 = vmatprep.subr.bf16.mxu0 0
          %1114 = vmatpush1.bf16.msra.mxu0 0
          %1115 = vmatprep.mubr.bf16.mxu0 0
          %1116 = vmatmul.mubr.bf16.gmra.mrb[0].mxu0 %v1075
          %v1117 = vpop.f32.mrb[0].mxu0
          %v1118 = vadd.f32 %v1062, %v1117
          %v1119 = vpop.f32.mrb[0].mxu0
          %v1120 = vadd.f32 %v1062, %v1119
          %v1121 = vpop.f32.mrb[0].mxu0
          %v1122 = vadd.f32 %v1067, %v1121
          %v1123 = vpop.f32.mrb[0].mxu0
          %v1124 = vadd.f32 %v1067, %v1123
          %1125 = vdwg.mxu0
          %v1126 = vld [vmem:[#allocation3] sm:$0xff]
          %v1127 = vld [vmem:[#allocation3 + $0x8] sm:$0xff]
          %1129 = vset.pattern.permute.xlu0 0
          %1130 = vperm.xlu0 %1129, %v1126
          %v1131 = vpop.permute.xlu0 %1130
          %1134 = vset.pattern.permute.xlu0 0
          %1135 = vperm.xlu0 %1134, %v1127
          %v1136 = vpop.permute.xlu0 %1135
          %v1138 = vadd.f32 %v1118, %v1131
          %v1139 = vadd.f32 %v1120, %v1131
          %v1140 = vadd.f32 %v1122, %v1136
          %v1141 = vadd.f32 %v1124, %v1136
          %v1142 = vxor.u32 %v1138, 2147483648
          %v1143 = vxor.u32 %v1139, 2147483648
          %v1144 = vxor.u32 %v1140, 2147483648
          %v1145 = vxor.u32 %v1141, 2147483648
          %v1146 = vmul.f32 %v1142, 1.442695
          %v1147 = vpow.pop %v1146
          %v1148 = vmul.f32 %v1143, 1.442695
          %v1149 = vpow.pop %v1148
          %v1150 = vmul.f32 %v1144, 1.442695
          %v1151 = vpow.pop %v1150
          %v1152 = vmul.f32 %v1145, 1.442695
          %v1153 = vpow.pop %v1152
          %v1154 = vadd.f32 %v1147, 1.0
          %v1155 = vadd.f32 %v1149, 1.0
          %v1156 = vadd.f32 %v1151, 1.0
          %v1157 = vadd.f32 %v1153, 1.0
          %v1158 = vrcp.pop %v1154
          %v1159 = vmul.f32 1.0, %v1158
          %v1160 = vrcp.pop %v1155
          %v1161 = vmul.f32 1.0, %v1160
          %v1162 = vrcp.pop %v1156
          %v1163 = vmul.f32 1.0, %v1162
          %v1164 = vrcp.pop %v1157
          %v1165 = vmul.f32 1.0, %v1164
          %v1166 = vmul.f32 %v778, %v1159
          %v1167 = vmul.f32 %v779, %v1161
          %v1168 = vmul.f32 %v780, %v1163
          %v1169 = vmul.f32 %v781, %v1165
          %v1170 = vadd.f32 %v599, %v1166
          %v1171 = vadd.f32 %v600, %v1167
          %v1172 = vadd.f32 %v601, %v1168
          %v1173 = vadd.f32 %v602, %v1169
          %1174 = vst [vmem:[%s562] sm:$0xff] %v1170
          %1175 = vst [vmem:[%s562 + $0x8] sm:$0xff] %v1171
          %1176 = vst [vmem:[%s562 + $0x10] sm:$0xff] %v1172
          %1177 = vst [vmem:[%s562 + $0x18] sm:$0xff] %v1173
        $region96: #{tpu_custom_call.1} parent=79 // pred_fallthru
          _
        %s1178 = sand.u32 %s394, 1
        %s1179 = scalar_lea.sflag [#allocation5], %s1178
        %s1180 = sand.u32 %s394, 1
        %s1181 = smul.addr %s1180, 32
        %s1182 = scalar_lea.vmem [#allocation4], %s1181
        // Predicated region
        $region97: #{tpu_custom_call.1} parent=79 // pred_check
          %p1183 = pneg %p404
        $region98: #{tpu_custom_call.1} parent=79 // pred_check_branch
          %1185 = sbr.rel (%p1183) target = $region100
        $region99: #{tpu_custom_call.1} parent=79 // pred_region
          %s1186 = smul.u32 %s36, %s35
          %s1187 = smul.u32 2, %s1186
          %s1189 = ssub.s32 512, 512
          %1190 = vsyncadd %s1179, %s1189
          %s1191 = smul.addr %s34, 4
          %s1192 = sadd.s32 %s1187, %s1191
          %s1193 = smul.addr %s1192, 128
          %s1194 = scalar_lea.hbm %s15, %s1193
          %s1195 = sshll.u32 %s1182, 4
          %s1196 = int_to_ptr.vmem [resolvable:$true] %s1195
          %1201 = dma.vmem_to_hbm [thread:$0]  %s1196, 512, %s1194, %s1179, 256, 256, 16
        $region100: #{tpu_custom_call.1} parent=79 // pred_fallthru
          _
      $region80: #{tpu_custom_call.1} parent=5 // pred_fallthru
        _
      %p1202 = scmp.le.s32.totalorder 2, %s24
      // Predicated region
      $region101: #{tpu_custom_call.1} parent=5 // pred_check
        %p1203 = pneg %p1202
      $region102: #{tpu_custom_call.1} parent=5 // pred_check_branch
        %1205 = sbr.rel (%p1203) target = $region104
      $region103: #{tpu_custom_call.1} parent=5 // pred_region
        %s1206 = ssub.s32 %s24, 2
        // Predicated region
        $region105: #{tpu_custom_call.1} parent=103 // pred_check
          %p1207 = pneg %p410
        $region106: #{tpu_custom_call.1} parent=103 // pred_check_branch
          %1209 = sbr.rel (%p1207) target = $region108
        $region107: #{tpu_custom_call.1} parent=103 // pred_region
          %s1210 = sand.u32 %s395, 1
          %s1211 = scalar_lea.sflag [#allocation5], %s1210
          %s1212 = sand.u32 %s395, 1
          %s1213 = smul.addr %s1212, 32
          %s1214 = scalar_lea.vmem [#allocation4], %s1213
          %1215 = dma.done %s1211, 512
        $region108: #{tpu_custom_call.1} parent=103 // pred_fallthru
          _
      $region104: #{tpu_custom_call.1} parent=5 // pred_fallthru
        _
    $region6: #{tpu_custom_call.1} parent=1 // loop_footer
      %s28 = sadd.s32 1, %s24
    $region7: #{tpu_custom_call.1} parent=1 // loop_footer_branch
      %23 = sbr.rel target = $region3
    $region8: #{tpu_custom_call.1} parent=1 // loop_exit
      _
    %1216 = vsyncpa [#allocation5], 1
    %s1217 = scalar_lea.sflag [#allocation5], 1
    %1218 = vsyncpa %s1217, 1

</llo_original>
